<compile_context>
chip_gen: v7x
topology: tpu7x:2x2x1
jax: 0.10.0
libtpu: 0.0.40
codegen_flags: <defaults>
</compile_context>

<pallas_src>
import functools
import math

import jax
import jax.numpy as jnp
from jax import lax
from jax.experimental import pallas as pl
from jax.experimental.pallas import tpu as pltpu


def _round_up(x, m):
    return ((x + m - 1) // m) * m


# ---------------------------------------------------------------------------
# Stage 1: shared q/k projection + v projection, computed once per element.
# ---------------------------------------------------------------------------
def proj_kernel(x_ref, wkt_ref, bkt_ref, wvt_ref, bvt_ref,
                q_ref, kt_ref, v_ref):
    # x_ref:   (1, C, tn) f32 channels-first spatial tile
    # wkt_ref: (Kc, C), bkt_ref: (Kc, 1)     -- f_key / f_query (shared)
    # wvt_ref: (Vc, C), bvt_ref: (Vc, 1)     -- f_value
    # q_ref:   (1, tn, Kc) bf16 ; kt_ref: (1, Kc, tn) bf16 ; v_ref: (1, tn, Vc) bf16
    x = x_ref[0]                                                        # (C, tn)
    # Canonical (Kc, C) @ (C, tn) -> (Kc, tn); f32 accumulation.
    kt = jnp.dot(wkt_ref[...], x,
                 preferred_element_type=jnp.float32) + bkt_ref[...]     # (Kc, tn)
    vt = jnp.dot(wvt_ref[...], x,
                 preferred_element_type=jnp.float32) + bvt_ref[...]     # (Vc, tn)
    kt_ref[0] = kt.astype(jnp.bfloat16)
    # q == k (shared weights): store the transposed copy for the query layout.
    q_ref[0] = jnp.transpose(kt).astype(jnp.bfloat16)                   # (tn, Kc)
    v_ref[0] = jnp.transpose(vt).astype(jnp.bfloat16)                   # (tn, Vc)


# ---------------------------------------------------------------------------
# Stage 2: flash-style attention + output projection + residual.
# ---------------------------------------------------------------------------
def nl_attn_kernel(q_ref, kt_ref, v_ref, xq_ref, wwt_ref, bw_ref, o_ref,
                   m_sc, l_sc, acc_sc, *, n_valid, block_k, mask_keys):
    # q_ref:  (1, tq, Kc) bf16   query tile (resident across the kv axis)
    # kt_ref: (1, Kc, tk) bf16   key tile, already transposed
    # v_ref:  (1, tk, Vc) bf16
    # xq_ref: (1, C, tq)  f32    residual input (read once per q tile)
    # wwt_ref:(Co, Vc), bw_ref: (Co, 1)   W 1x1 conv (zero-init in the module)
    # o_ref:  (1, C, tq)
    # m_sc, l_sc: (tq, 1) f32 ; acc_sc: (tq, Vc) f32  -- online-softmax carries
    kv = pl.program_id(2)

    @pl.when(kv == 0)
    def _init():
        m_sc[...] = jnp.full(m_sc.shape, -jnp.inf, jnp.float32)
        l_sc[...] = jnp.zeros(l_sc.shape, jnp.float32)
        acc_sc[...] = jnp.zeros(acc_sc.shape, jnp.float32)

    # Canonical (tq, Kc) x (Kc, tk) -> (tq, tk), bf16 operands, f32 acc.
    s = jnp.dot(q_ref[0], kt_ref[0], preferred_element_type=jnp.float32)

    if mask_keys:  # static: only emitted when the spatial axis was padded
        col = kv * block_k + lax.broadcasted_iota(jnp.int32, s.shape, 1)
        s = jnp.where(col < n_valid, s, -jnp.inf)

    # Online softmax update.
    m_prev = m_sc[...]
    m_new = jnp.maximum(m_prev, jnp.max(s, axis=-1, keepdims=True))
    alpha = jnp.exp(m_prev - m_new)                                      # (tq, 1)
    p = jnp.exp(s - m_new)                                               # (tq, tk)
    l_sc[...] = alpha * l_sc[...] + jnp.sum(p, axis=-1, keepdims=True)
    # Canonical (tq, tk) x (tk, Vc) -> (tq, Vc).
    acc_sc[...] = alpha * acc_sc[...] + jnp.dot(
        p.astype(jnp.bfloat16), v_ref[0], preferred_element_type=jnp.float32)
    m_sc[...] = m_new

    @pl.when(kv == pl.num_programs(2) - 1)
    def _finalize():
        ctx = acc_sc[...] / l_sc[...]                 # exact div, once per q tile
        # (Co, Vc) contracted with (tq, Vc) on Vc -> (Co, tq); once per q tile.
        out = lax.dot_general(wwt_ref[...], ctx, (((1,), (1,)), ((), ())),
                              preferred_element_type=jnp.float32) + bw_ref[...]
        o_ref[0] = (out + xq_ref[0]).astype(o_ref.dtype)


def nl_forward(x_nchw, params, *, block_q=256, block_k=256):
    """x_nchw: (B, C, H, W) float32. Returns (B, C, H, W)."""
    B, C, H, W = x_nchw.shape
    N = H * W
    wk, bk, wv, bv, ww, bw = params
    Kc, Vc, Co = wk.shape[1], wv.shape[1], ww.shape[1]
    assert Co == C, "residual add requires out_channels == in_channels"

    # Pad projection channels to full lanes (exact: padded channels are zero).
    Kc_p = _round_up(Kc, 128)
    Vc_p = _round_up(Vc, 128)

    # Spatial tiling; pad N to a block multiple and mask padded keys in-kernel.
    n_ru = _round_up(N, 128)
    block_q = min(block_q, n_ru)
    block_k = min(block_k, n_ru)
    N_pad = _round_up(N, math.lcm(block_q, block_k))
    pad_n = N_pad - N
    nq = N_pad // block_q
    nk = N_pad // block_k

    f32 = jnp.float32
    x_flat = x_nchw.reshape(B, C, N)
    if pad_n:
        x_flat = jnp.pad(x_flat, ((0, 0), (0, 0), (0, pad_n)))

    # Pre-transposed / zero-padded weight layouts (done once in the wrapper).
    wkt = jnp.zeros((Kc_p, C), f32).at[:Kc, :].set(wk.T.astype(f32))
    bkt = jnp.zeros((Kc_p, 1), f32).at[:Kc, 0].set(bk.astype(f32))
    wvt = jnp.zeros((Vc_p, C), f32).at[:Vc, :].set(wv.T.astype(f32))
    bvt = jnp.zeros((Vc_p, 1), f32).at[:Vc, 0].set(bv.astype(f32))
    wwt = jnp.zeros((Co, Vc_p), f32).at[:, :Vc].set(ww.T.astype(f32))
    bw2 = bw.reshape(Co, 1).astype(f32)

    # ---------------- Stage 1: projections (once per element) ----------------
    tn = block_q
    proj_cost = pl.CostEstimate(
        flops=2 * B * N_pad * C * (Kc_p + Vc_p),
        transcendentals=0,
        bytes_accessed=(4 * B * C * N_pad
                        + 2 * B * N_pad * (2 * Kc_p + Vc_p)
                        + 4 * (C * (Kc_p + Vc_p) + Kc_p + Vc_p)))

    q_hbm, kt_hbm, v_hbm = pl.pallas_call(
        proj_kernel,
        out_shape=(jax.ShapeDtypeStruct((B, N_pad, Kc_p), jnp.bfloat16),
                   jax.ShapeDtypeStruct((B, Kc_p, N_pad), jnp.bfloat16),
                   jax.ShapeDtypeStruct((B, N_pad, Vc_p), jnp.bfloat16)),
        grid_spec=pltpu.PrefetchScalarGridSpec(
            num_scalar_prefetch=0,
            grid=(B, N_pad // tn),
            in_specs=[
                pl.BlockSpec((1, C, tn), lambda b, n: (b, 0, n)),
                pl.BlockSpec((Kc_p, C), lambda b, n: (0, 0)),
                pl.BlockSpec((Kc_p, 1), lambda b, n: (0, 0)),
                pl.BlockSpec((Vc_p, C), lambda b, n: (0, 0)),
                pl.BlockSpec((Vc_p, 1), lambda b, n: (0, 0)),
            ],
            out_specs=[
                pl.BlockSpec((1, tn, Kc_p), lambda b, n: (b, n, 0)),
                pl.BlockSpec((1, Kc_p, tn), lambda b, n: (b, 0, n)),
                pl.BlockSpec((1, tn, Vc_p), lambda b, n: (b, n, 0)),
            ],
        ),
        compiler_params=pltpu.CompilerParams(
            dimension_semantics=("parallel", "parallel"),
            vmem_limit_bytes=48 * 1024 * 1024,
        ),
        cost_estimate=proj_cost,
    )(x_flat, wkt, bkt, wvt, bvt)

    # ---------------- Stage 2: attention + output proj + residual ------------
    attn_cost = pl.CostEstimate(
        flops=2 * B * N_pad * N_pad * (Kc_p + Vc_p) + 2 * B * N_pad * Vc_p * Co,
        transcendentals=B * N_pad * N_pad,
        bytes_accessed=(2 * B * N_pad * Kc_p                    # Q (once)
                        + 2 * B * nq * N_pad * (Kc_p + Vc_p)    # K, V re-read per q pass
                        + 4 * B * C * N_pad                     # residual x
                        + 4 * B * C * N_pad                     # output
                        + 4 * (Co * Vc_p + Co)))

    kernel = functools.partial(nl_attn_kernel, n_valid=N, block_k=block_k,
                               mask_keys=pad_n > 0)

    out_flat = pl.pallas_call(
        kernel,
        out_shape=jax.ShapeDtypeStruct((B, C, N_pad), x_nchw.dtype),
        grid_spec=pltpu.PrefetchScalarGridSpec(
            num_scalar_prefetch=0,
            grid=(B, nq, nk),
            in_specs=[
                pl.BlockSpec((1, block_q, Kc_p), lambda b, q, k: (b, q, 0)),  # Q
                pl.BlockSpec((1, Kc_p, block_k), lambda b, q, k: (b, 0, k)),  # K^T
                pl.BlockSpec((1, block_k, Vc_p), lambda b, q, k: (b, k, 0)),  # V
                pl.BlockSpec((1, C, block_q), lambda b, q, k: (b, 0, q)),     # residual
                pl.BlockSpec((Co, Vc_p), lambda b, q, k: (0, 0)),             # W^T
                pl.BlockSpec((Co, 1), lambda b, q, k: (0, 0)),                # W bias
            ],
            out_specs=pl.BlockSpec((1, C, block_q), lambda b, q, k: (b, 0, q)),
            scratch_shapes=[
                pltpu.VMEM((block_q, 1), jnp.float32),      # running row max
                pltpu.VMEM((block_q, 1), jnp.float32),      # running denominator
                pltpu.VMEM((block_q, Vc_p), jnp.float32),   # running context
            ],
        ),
        compiler_params=pltpu.CompilerParams(
            dimension_semantics=("parallel", "parallel", "arbitrary"),
            vmem_limit_bytes=48 * 1024 * 1024,
        ),
        cost_estimate=attn_cost,
    )(q_hbm, kt_hbm, v_hbm, x_flat, wwt, bw2)

    if pad_n:
        out_flat = out_flat[:, :, :N]
    return out_flat.reshape(B, C, H, W)


def make_params(key, in_channels, key_channels, value_channels, out_channels=None,
                *, zero_w=True):
    """Parameter init mirroring the module (W conv zero-initialized by default).

    PyTorch 1x1 conv weight is (out, in, 1, 1); we store the matmul form (in, out).
    """
    if out_channels is None:
        out_channels = in_channels
    k1, k2, k3, k4, k5, k6 = jax.random.split(key, 6)
    wk = jax.random.normal(k1, (in_channels, key_channels), jnp.float32) * 0.1
    bk = jax.random.normal(k2, (key_channels,), jnp.float32) * 0.1
    wv = jax.random.normal(k3, (in_channels, value_channels), jnp.float32) * 0.1
    bv = jax.random.normal(k4, (value_channels,), jnp.float32) * 0.1
    if zero_w:
        ww = jnp.zeros((value_channels, out_channels), jnp.float32)
        bw = jnp.zeros((out_channels,), jnp.float32)
    else:
        ww = jax.random.normal(k5, (value_channels, out_channels), jnp.float32) * 0.1
        bw = jax.random.normal(k6, (out_channels,), jnp.float32) * 0.1
    return wk, bk, wv, bv, ww, bw


def nl_reference(x_nchw, params):
    """Pure-JAX reference of the PyTorch forward."""
    B, C, H, W = x_nchw.shape
    N = H * W
    wk, bk, wv, bv, ww, bw = params
    x = jnp.transpose(x_nchw.reshape(B, C, N), (0, 2, 1))        # (B, N, C)
    qk = x @ wk + bk                                             # (B, N, Kc)
    v = x @ wv + bv                                              # (B, N, Vc)
    sim = jnp.einsum("bnk,bmk->bnm", qk, qk)                     # (B, N, N)
    sim = jax.nn.softmax(sim, axis=-1)
    ctx = jnp.einsum("bnm,bmv->bnv", sim, v)                     # (B, N, Vc)
    out = ctx @ ww + bw + x                                      # (B, N, C)
    return jnp.transpose(out, (0, 2, 1)).reshape(B, C, H, W)


if __name__ == "__main__":
    B, C, H, W = 2, 4, 16, 16
    KEY_CH, VAL_CH = 8, 8

    root = jax.random.PRNGKey(0)
    kx, kp = jax.random.split(root)
    x = jax.random.normal(kx, (B, C, H, W), jnp.float32)

    # 1) Module-faithful init (W zero-initialized): output must equal x exactly.
    params_init = make_params(kp, C, KEY_CH, VAL_CH)
    out0 = jax.block_until_ready(nl_forward(x, params_init))
    assert out0.shape == (B, C, H, W)
    assert jnp.allclose(out0, nl_reference(x, params_init), atol=1e-5, rtol=1e-5), \
        "mismatch vs reference (zero-W init)"

    # 2) Nonzero W: exercises the full attention + output-projection path.
    params_test = make_params(kp, C, KEY_CH, VAL_CH, zero_w=False)
    out1 = jax.block_until_ready(nl_forward(x, params_test))
    ref1 = nl_reference(x, params_test)
    assert jnp.allclose(out1, ref1, atol=2e-2, rtol=2e-2), \
        f"mismatch (nonzero W), max abs err {float(jnp.max(jnp.abs(out1 - ref1)))}"

    # 3) Non-divisible spatial size: exercises the padding + key-masking path.
    x_odd = jax.random.normal(kx, (B, C, 15, 15), jnp.float32)
    out2 = jax.block_until_ready(nl_forward(x_odd, params_test))
    ref2 = nl_reference(x_odd, params_test)
    assert jnp.allclose(out2, ref2, atol=2e-2, rtol=2e-2), \
        f"mismatch (padded N), max abs err {float(jnp.max(jnp.abs(out2 - ref2)))}"

    print("KERNEL_OK")
</pallas_src>

<mosaic_0001>
module attributes {stable_mosaic.version = 11 : i64} {
  func.func @proj_kernel(%arg0: i32, %arg1: i32, %arg2: memref<1x4x256xf32, #tpu.memory_space<vmem>>, %arg3: memref<128x4xf32, #tpu.memory_space<vmem>>, %arg4: memref<128x1xf32, #tpu.memory_space<vmem>>, %arg5: memref<128x4xf32, #tpu.memory_space<vmem>>, %arg6: memref<128x1xf32, #tpu.memory_space<vmem>>, %arg7: memref<1x256x128xbf16, #tpu.memory_space<vmem>>, %arg8: memref<1x128x256xbf16, #tpu.memory_space<vmem>>, %arg9: memref<1x256x128xbf16, #tpu.memory_space<vmem>>) attributes {dimension_semantics = [#tpu.dimension_semantics<parallel>, #tpu.dimension_semantics<parallel>], iteration_bounds = array<i64: 2, 1>, scalar_prefetch = 0 : i64, scratch_operands = 0 : i64, tpu.core_type = #tpu.core_type<tc>, window_params = [{transform_indices = @transform_0, window_bounds = array<i64: 1, 4, 256>}, {pipeline_mode = #tpu.pipeline_mode<synchronous>, transform_indices = @transform_1, window_bounds = array<i64: 128, 4>}, {pipeline_mode = #tpu.pipeline_mode<synchronous>, transform_indices = @transform_2, window_bounds = array<i64: 128, 1>}, {pipeline_mode = #tpu.pipeline_mode<synchronous>, transform_indices = @transform_3, window_bounds = array<i64: 128, 4>}, {pipeline_mode = #tpu.pipeline_mode<synchronous>, transform_indices = @transform_4, window_bounds = array<i64: 128, 1>}, {transform_indices = @transform_5, window_bounds = array<i64: 1, 256, 128>}, {transform_indices = @transform_6, window_bounds = array<i64: 1, 128, 256>}, {transform_indices = @transform_7, window_bounds = array<i64: 1, 256, 128>}]} {
    %c0 = arith.constant 0 : index
    %c0_0 = arith.constant 0 : index
    %c0_1 = arith.constant 0 : index
    %0 = vector.load %arg2[%c0, %c0_0, %c0_1] : memref<1x4x256xf32, #tpu.memory_space<vmem>>, vector<1x4x256xf32>
    %1 = vector.shape_cast %0 : vector<1x4x256xf32> to vector<4x256xf32>
    %c0_2 = arith.constant 0 : index
    %c0_3 = arith.constant 0 : index
    %2 = vector.load %arg3[%c0_2, %c0_3] : memref<128x4xf32, #tpu.memory_space<vmem>>, vector<128x4xf32>
    %cst = arith.constant dense<0.000000e+00> : vector<128x256xf32>
    %3 = tpu.matmul %2, %1, %cst {dimension_numbers = #tpu.dot_dimension_numbers<[1], [0], [0], [1], [0, 0, 1, 1], [], []>} : vector<128x4xf32>, vector<4x256xf32>, vector<128x256xf32> -> vector<128x256xf32>
    %c0_4 = arith.constant 0 : index
    %c0_5 = arith.constant 0 : index
    %4 = vector.load %arg4[%c0_4, %c0_5] : memref<128x1xf32, #tpu.memory_space<vmem>>, vector<128x1xf32>
    %5 = vector.broadcast %4 : vector<128x1xf32> to vector<128x256xf32>
    %6 = arith.addf %3, %5 : vector<128x256xf32>
    %c0_6 = arith.constant 0 : index
    %c0_7 = arith.constant 0 : index
    %7 = vector.load %arg5[%c0_6, %c0_7] : memref<128x4xf32, #tpu.memory_space<vmem>>, vector<128x4xf32>
    %cst_8 = arith.constant dense<0.000000e+00> : vector<128x256xf32>
    %8 = tpu.matmul %7, %1, %cst_8 {dimension_numbers = #tpu.dot_dimension_numbers<[1], [0], [0], [1], [0, 0, 1, 1], [], []>} : vector<128x4xf32>, vector<4x256xf32>, vector<128x256xf32> -> vector<128x256xf32>
    %c0_9 = arith.constant 0 : index
    %c0_10 = arith.constant 0 : index
    %9 = vector.load %arg6[%c0_9, %c0_10] : memref<128x1xf32, #tpu.memory_space<vmem>>, vector<128x1xf32>
    %10 = vector.broadcast %9 : vector<128x1xf32> to vector<128x256xf32>
    %11 = arith.addf %8, %10 : vector<128x256xf32>
    %12 = arith.truncf %6 : vector<128x256xf32> to vector<128x256xbf16>
    %c0_11 = arith.constant 0 : index
    %c0_12 = arith.constant 0 : index
    %c0_13 = arith.constant 0 : index
    %13 = vector.load %arg8[%c0_11, %c0_12, %c0_13] : memref<1x128x256xbf16, #tpu.memory_space<vmem>>, vector<1x128x256xbf16>
    %14 = vector.shape_cast %13 : vector<1x128x256xbf16> to vector<128x256xbf16>
    %15 = vector.shape_cast %12 : vector<128x256xbf16> to vector<1x128x256xbf16>
    tpu.vector_store %arg8[%c0_11, %c0_12, %c0_13], %15 {strides = array<i32>} : memref<1x128x256xbf16, #tpu.memory_space<vmem>>, vector<1x128x256xbf16>,
    %16 = tpu.transpose %6, [1, 0] : vector<128x256xf32> -> vector<256x128xf32>
    %17 = arith.truncf %16 : vector<256x128xf32> to vector<256x128xbf16>
    %c0_14 = arith.constant 0 : index
    %c0_15 = arith.constant 0 : index
    %c0_16 = arith.constant 0 : index
    %18 = vector.load %arg7[%c0_14, %c0_15, %c0_16] : memref<1x256x128xbf16, #tpu.memory_space<vmem>>, vector<1x256x128xbf16>
    %19 = vector.shape_cast %18 : vector<1x256x128xbf16> to vector<256x128xbf16>
    %20 = vector.shape_cast %17 : vector<256x128xbf16> to vector<1x256x128xbf16>
    tpu.vector_store %arg7[%c0_14, %c0_15, %c0_16], %20 {strides = array<i32>} : memref<1x256x128xbf16, #tpu.memory_space<vmem>>, vector<1x256x128xbf16>,
    %21 = tpu.transpose %11, [1, 0] : vector<128x256xf32> -> vector<256x128xf32>
    %22 = arith.truncf %21 : vector<256x128xf32> to vector<256x128xbf16>
    %c0_17 = arith.constant 0 : index
    %c0_18 = arith.constant 0 : index
    %c0_19 = arith.constant 0 : index
    %23 = vector.load %arg9[%c0_17, %c0_18, %c0_19] : memref<1x256x128xbf16, #tpu.memory_space<vmem>>, vector<1x256x128xbf16>
    %24 = vector.shape_cast %23 : vector<1x256x128xbf16> to vector<256x128xbf16>
    %25 = vector.shape_cast %22 : vector<256x128xbf16> to vector<1x256x128xbf16>
    tpu.vector_store %arg9[%c0_17, %c0_18, %c0_19], %25 {strides = array<i32>} : memref<1x256x128xbf16, #tpu.memory_space<vmem>>, vector<1x256x128xbf16>,
    return
  }
  func.func @transform_0(%arg0: i32, %arg1: i32) -> (i32, i32, i32) {
    %c0_i32 = arith.constant 0 : i32
    %c0_i32_0 = arith.constant 0 : i32
    return %arg0, %c0_i32, %arg1 : i32, i32, i32
  }
  func.func @transform_1(%arg0: i32, %arg1: i32) -> (i32, i32) {
    %c0_i32 = arith.constant 0 : i32
    %c0_i32_0 = arith.constant 0 : i32
    %c0_i32_1 = arith.constant 0 : i32
    return %c0_i32, %c0_i32_0 : i32, i32
  }
  func.func @transform_2(%arg0: i32, %arg1: i32) -> (i32, i32) {
    %c0_i32 = arith.constant 0 : i32
    %c0_i32_0 = arith.constant 0 : i32
    %c0_i32_1 = arith.constant 0 : i32
    return %c0_i32, %c0_i32_0 : i32, i32
  }
  func.func @transform_3(%arg0: i32, %arg1: i32) -> (i32, i32) {
    %c0_i32 = arith.constant 0 : i32
    %c0_i32_0 = arith.constant 0 : i32
    %c0_i32_1 = arith.constant 0 : i32
    return %c0_i32, %c0_i32_0 : i32, i32
  }
  func.func @transform_4(%arg0: i32, %arg1: i32) -> (i32, i32) {
    %c0_i32 = arith.constant 0 : i32
    %c0_i32_0 = arith.constant 0 : i32
    %c0_i32_1 = arith.constant 0 : i32
    return %c0_i32, %c0_i32_0 : i32, i32
  }
  func.func @transform_5(%arg0: i32, %arg1: i32) -> (i32, i32, i32) {
    %c0_i32 = arith.constant 0 : i32
    %c0_i32_0 = arith.constant 0 : i32
    return %arg0, %arg1, %c0_i32 : i32, i32, i32
  }
  func.func @transform_6(%arg0: i32, %arg1: i32) -> (i32, i32, i32) {
    %c0_i32 = arith.constant 0 : i32
    %c0_i32_0 = arith.constant 0 : i32
    return %arg0, %c0_i32, %arg1 : i32, i32, i32
  }
  func.func @transform_7(%arg0: i32, %arg1: i32) -> (i32, i32, i32) {
    %c0_i32 = arith.constant 0 : i32
    %c0_i32_0 = arith.constant 0 : i32
    return %arg0, %arg1, %c0_i32 : i32, i32, i32
  }
}

</mosaic_0001>

<llo_original>
// kernel: tpu_custom_call.1
$region0: #{tpu_custom_call.1}
  #allocation0 [shape = 'u32[]', space=smem, size = 0x4, offset = 0x4, fixed_abs, tag = 'smem constant byte address 0x4 - core index']
  #allocation1 [shape = 'u32[144,128]{1,0:T(1,128)}', space=vmem, size = 0x12000, scoped, tag = 'internal scratch']
  %s0 = inlined_call_operand.vmem [shape: f32[2,4,256], index: 0, kind: input, shape index: {}]
  %s1 = inlined_call_operand.vmem [shape: f32[128,4], index: 1, kind: input, shape index: {}]
  %s2 = inlined_call_operand.vmem [shape: f32[128,1], index: 2, kind: input, shape index: {}]
  %s3 = inlined_call_operand.vmem [shape: f32[128,4], index: 3, kind: input, shape index: {}]
  %s4 = inlined_call_operand.vmem [shape: f32[128,1], index: 4, kind: input, shape index: {}]
  %s5 = inlined_call_operand.hbm [shape: bf16[2,256,128], index: 5, kind: output, shape index: {0}]
  %s6 = inlined_call_operand.hbm [shape: bf16[2,128,256], index: 6, kind: output, shape index: {1}]
  %s7 = inlined_call_operand.hbm [shape: bf16[2,256,128], index: 7, kind: output, shape index: {2}]
  %8 = xla_tuple %s5, %s6, %s7
  %s9 = sld [smem:[#allocation0]]
  $region69: #{tpu_custom_call.1} parent=0
    _
  %s11 = ssub.s32 1, %s9
  %s12 = scalar_select 0, %s11, %s9
  $region1: #{tpu_custom_call.1} parent=0
    #allocation2 [shape = 'u8[131072]{0}', space=vmem, size = 0x20000, scoped, tag = 'output window, operand 0']
    #allocation3 [shape = 's32[2]{0}', space=sflag, size = 0x8, scoped, tag = 'scoped memory for tpu_custom_call.1']
    #allocation4 [shape = 'u8[131072]{0}', space=vmem, size = 0x20000, scoped, tag = 'output window, operand 1']
    #allocation5 [shape = 's32[2]{0}', space=sflag, size = 0x8, scoped, tag = 'scoped memory for tpu_custom_call.1']
    #allocation6 [shape = 'u8[131072]{0}', space=vmem, size = 0x20000, scoped, tag = 'output window, operand 2']
    %13 = vsyncpa [#allocation3], 0
    %s14 = scalar_lea.sflag [#allocation3], 1
    %15 = vsyncpa %s14, 0
    %16 = vsyncpa [#allocation5], 0
    %s17 = scalar_lea.sflag [#allocation5], 1
    %18 = vsyncpa %s17, 0
    loop: start=0, step=1, limit=4
    $region2: #{tpu_custom_call.1} parent=1 // loop_pre_header
      _
    $region3: #{tpu_custom_call.1} parent=1 // loop_header
      %s20 = sphi 0, %s24
      %p21 = scmp.ge.s32.totalorder %s20, 4
      %s27 = sphi 0, %s39
      %s28 = sphi 0, %s35
      %s29 = sphi 0, %s27
      %s30 = sphi 0, %s28
      %s31 = sphi 0, %s29
      %s32 = sphi 0, %s30
      %s44 = sphi 0, %s46
      %s47 = sphi 0, %s44
      %s48 = sphi 0, %s47
      %s64 = sphi 0, %s48
      %s68 = sphi 0, %s68
      %s70 = sphi 0, %s68
      %s71 = sphi 0, %s70
      %s85 = sphi 0, %s71
      %s89 = sphi 0, %s89
      %s91 = sphi 0, %s89
      %s92 = sphi 0, %s91
      %s106 = sphi 0, %s92
      %s110 = sphi 0, %s110
      %s112 = sphi 0, %s110
      %s113 = sphi 0, %s112
      %s127 = sphi 0, %s113
      %s131 = sphi 0, %s131
      %s133 = sphi 0, %s131
      %s134 = sphi 0, %s133
      %s148 = sphi 0, %s134
      %s156 = sphi 0, %s158
      %s159 = sphi 0, %s156
      %s160 = sphi 0, %s159
      %s176 = sphi 0, %s160
      %s184 = sphi 0, %s186
      %s187 = sphi 0, %s184
      %s188 = sphi 0, %s187
      %s204 = sphi 0, %s188
      %s212 = sphi 0, %s214
      %s215 = sphi 0, %s212
      %s216 = sphi 0, %s215
      %s232 = sphi 0, %s216
    $region4: #{tpu_custom_call.1} parent=1 // loop_header_branch
      %23 = sbr.rel (%p21) target = $region8
    $region5: #{tpu_custom_call.1} parent=1 // loop_body
      %s25 = ssub.s32 %s20, 1
      %s26 = ssub.s32 %s20, 2
      %s33 = sadd.s32 1, %s28
      %p34 = scmp.ge.s32.totalorder %s33, 1
      %s35 = scalar_select %p34, 0, %s33
      %s36 = sadd.s32 1, %s27
      %s37 = scalar_select %p34, %s36, %s27
      %p38 = scmp.ge.s32.totalorder %s37, 2
      %s39 = scalar_select %p38, 0, %s37
      %s40 = ssub.s32 %s27, %s39
      %s41 = ssub.s32 %s28, %s35
      %s42 = sor.u32 %s40, %s41
      %p43 = scmp.eq.s32.totalorder %s42, 0
      %s45 = sadd.s32 %s44, 1
      %s46 = scalar_select %p43, %s44, %s45
      %p49 = pneg %p43
      %p50 = scmp.eq.s32.totalorder %s20, 1
      %p51 = por %p49, %p50
      %p52 = scmp.ne.s32.totalorder %s44, %s47
      %p53 = scmp.eq.s32.totalorder %s20, 0
      %p54 = por %p52, %p53
      %p55 = scmp.ne.s32.totalorder %s44, %s47
      %p56 = scmp.eq.s32.totalorder %s25, 1
      %p57 = por %p55, %p56
      %p58 = scmp.ne.s32.totalorder %s47, %s48
      %p59 = scmp.eq.s32.totalorder %s25, 0
      %p60 = por %p58, %p59
      %p61 = scmp.ne.s32.totalorder %s47, %s48
      %p62 = scmp.eq.s32.totalorder %s26, 1
      %p63 = por %p61, %p62
      %p65 = scmp.ne.s32.totalorder %s48, %s64
      %p66 = scmp.eq.s32.totalorder %s26, 0
      %p67 = por %p65, %p66
      %s69 = sadd.s32 %s68, 1
      %p72 = scmp.eq.s32.totalorder %s20, 1
      %p73 = scmp.ne.s32.totalorder %s68, %s70
      %p74 = scmp.eq.s32.totalorder %s20, 0
      %p75 = por %p73, %p74
      %p76 = scmp.ne.s32.totalorder %s68, %s70
      %p77 = scmp.eq.s32.totalorder %s25, 1
      %p78 = por %p76, %p77
      %p79 = scmp.ne.s32.totalorder %s70, %s71
      %p80 = scmp.eq.s32.totalorder %s25, 0
      %p81 = por %p79, %p80
      %p82 = scmp.ne.s32.totalorder %s70, %s71
      %p83 = scmp.eq.s32.totalorder %s26, 1
      %p84 = por %p82, %p83
      %p86 = scmp.ne.s32.totalorder %s71, %s85
      %p87 = scmp.eq.s32.totalorder %s26, 0
      %p88 = por %p86, %p87
      %s90 = sadd.s32 %s89, 1
      %p93 = scmp.eq.s32.totalorder %s20, 1
      %p94 = scmp.ne.s32.totalorder %s89, %s91
      %p95 = scmp.eq.s32.totalorder %s20, 0
      %p96 = por %p94, %p95
      %p97 = scmp.ne.s32.totalorder %s89, %s91
      %p98 = scmp.eq.s32.totalorder %s25, 1
      %p99 = por %p97, %p98
      %p100 = scmp.ne.s32.totalorder %s91, %s92
      %p101 = scmp.eq.s32.totalorder %s25, 0
      %p102 = por %p100, %p101
      %p103 = scmp.ne.s32.totalorder %s91, %s92
      %p104 = scmp.eq.s32.totalorder %s26, 1
      %p105 = por %p103, %p104
      %p107 = scmp.ne.s32.totalorder %s92, %s106
      %p108 = scmp.eq.s32.totalorder %s26, 0
      %p109 = por %p107, %p108
      %s111 = sadd.s32 %s110, 1
      %p114 = scmp.eq.s32.totalorder %s20, 1
      %p115 = scmp.ne.s32.totalorder %s110, %s112
      %p116 = scmp.eq.s32.totalorder %s20, 0
      %p117 = por %p115, %p116
      %p118 = scmp.ne.s32.totalorder %s110, %s112
      %p119 = scmp.eq.s32.totalorder %s25, 1
      %p120 = por %p118, %p119
      %p121 = scmp.ne.s32.totalorder %s112, %s113
      %p122 = scmp.eq.s32.totalorder %s25, 0
      %p123 = por %p121, %p122
      %p124 = scmp.ne.s32.totalorder %s112, %s113
      %p125 = scmp.eq.s32.totalorder %s26, 1
      %p126 = por %p124, %p125
      %p128 = scmp.ne.s32.totalorder %s113, %s127
      %p129 = scmp.eq.s32.totalorder %s26, 0
      %p130 = por %p128, %p129
      %s132 = sadd.s32 %s131, 1
      %p135 = scmp.eq.s32.totalorder %s20, 1
      %p136 = scmp.ne.s32.totalorder %s131, %s133
      %p137 = scmp.eq.s32.totalorder %s20, 0
      %p138 = por %p136, %p137
      %p139 = scmp.ne.s32.totalorder %s131, %s133
      %p140 = scmp.eq.s32.totalorder %s25, 1
      %p141 = por %p139, %p140
      %p142 = scmp.ne.s32.totalorder %s133, %s134
      %p143 = scmp.eq.s32.totalorder %s25, 0
      %p144 = por %p142, %p143
      %p145 = scmp.ne.s32.totalorder %s133, %s134
      %p146 = scmp.eq.s32.totalorder %s26, 1
      %p147 = por %p145, %p146
      %p149 = scmp.ne.s32.totalorder %s134, %s148
      %p150 = scmp.eq.s32.totalorder %s26, 0
      %p151 = por %p149, %p150
      %s152 = ssub.s32 %s27, %s39
      %s153 = ssub.s32 %s28, %s35
      %s154 = sor.u32 %s152, %s153
      %p155 = scmp.eq.s32.totalorder %s154, 0
      %s157 = sadd.s32 %s156, 1
      %s158 = scalar_select %p155, %s156, %s157
      %p161 = pneg %p155
      %p162 = scmp.eq.s32.totalorder %s20, 1
      %p163 = por %p161, %p162
      %p164 = scmp.ne.s32.totalorder %s156, %s159
      %p165 = scmp.eq.s32.totalorder %s20, 0
      %p166 = por %p164, %p165
      %p167 = scmp.ne.s32.totalorder %s156, %s159
      %p168 = scmp.eq.s32.totalorder %s25, 1
      %p169 = por %p167, %p168
      %p170 = scmp.ne.s32.totalorder %s159, %s160
      %p171 = scmp.eq.s32.totalorder %s25, 0
      %p172 = por %p170, %p171
      %p173 = scmp.ne.s32.totalorder %s159, %s160
      %p174 = scmp.eq.s32.totalorder %s26, 1
      %p175 = por %p173, %p174
      %p177 = scmp.ne.s32.totalorder %s160, %s176
      %p178 = scmp.eq.s32.totalorder %s26, 0
      %p179 = por %p177, %p178
      %s180 = ssub.s32 %s27, %s39
      %s181 = ssub.s32 %s28, %s35
      %s182 = sor.u32 %s180, %s181
      %p183 = scmp.eq.s32.totalorder %s182, 0
      %s185 = sadd.s32 %s184, 1
      %s186 = scalar_select %p183, %s184, %s185
      %p189 = pneg %p183
      %p190 = scmp.eq.s32.totalorder %s20, 1
      %p191 = por %p189, %p190
      %p192 = scmp.ne.s32.totalorder %s184, %s187
      %p193 = scmp.eq.s32.totalorder %s20, 0
      %p194 = por %p192, %p193
      %p195 = scmp.ne.s32.totalorder %s184, %s187
      %p196 = scmp.eq.s32.totalorder %s25, 1
      %p197 = por %p195, %p196
      %p198 = scmp.ne.s32.totalorder %s187, %s188
      %p199 = scmp.eq.s32.totalorder %s25, 0
      %p200 = por %p198, %p199
      %p201 = scmp.ne.s32.totalorder %s187, %s188
      %p202 = scmp.eq.s32.totalorder %s26, 1
      %p203 = por %p201, %p202
      %p205 = scmp.ne.s32.totalorder %s188, %s204
      %p206 = scmp.eq.s32.totalorder %s26, 0
      %p207 = por %p205, %p206
      %s208 = ssub.s32 %s27, %s39
      %s209 = ssub.s32 %s28, %s35
      %s210 = sor.u32 %s208, %s209
      %p211 = scmp.eq.s32.totalorder %s210, 0
      %s213 = sadd.s32 %s212, 1
      %s214 = scalar_select %p211, %s212, %s213
      %p217 = pneg %p211
      %p218 = scmp.eq.s32.totalorder %s20, 1
      %p219 = por %p217, %p218
      %p220 = scmp.ne.s32.totalorder %s212, %s215
      %p221 = scmp.eq.s32.totalorder %s20, 0
      %p222 = por %p220, %p221
      %p223 = scmp.ne.s32.totalorder %s212, %s215
      %p224 = scmp.eq.s32.totalorder %s25, 1
      %p225 = por %p223, %p224
      %p226 = scmp.ne.s32.totalorder %s215, %s216
      %p227 = scmp.eq.s32.totalorder %s25, 0
      %p228 = por %p226, %p227
      %p229 = scmp.ne.s32.totalorder %s215, %s216
      %p230 = scmp.eq.s32.totalorder %s26, 1
      %p231 = por %p229, %p230
      %p233 = scmp.ne.s32.totalorder %s216, %s232
      %p234 = scmp.eq.s32.totalorder %s26, 0
      %p235 = por %p233, %p234
      %p236 = scmp.le.s32.totalorder 1, %s20
      %p237 = scmp.lt.s32.totalorder %s20, 3
      %p238 = pnand %p236, %p237
      %p239 = pneg %p238
      // Predicated region
      $region9: #{tpu_custom_call.1} parent=5 // pred_check
        _
      $region10: #{tpu_custom_call.1} parent=5 // pred_check_branch
        %241 = sbr.rel (%p238) target = $region12
      $region11: #{tpu_custom_call.1} parent=5 // pred_region
        %s242 = ssub.s32 %s20, 1
        // Predicated region
        $region13: #{tpu_custom_call.1} parent=11 // pred_check
          %p243 = pneg %p81
        $region14: #{tpu_custom_call.1} parent=11 // pred_check_branch
          %245 = sbr.rel (%p243) target = $region16
        $region15: #{tpu_custom_call.1} parent=11 // pred_region
          _
        $region16: #{tpu_custom_call.1} parent=11 // pred_fallthru
          _
        // Predicated region
        $region17: #{tpu_custom_call.1} parent=11 // pred_check
          %p246 = pneg %p102
        $region18: #{tpu_custom_call.1} parent=11 // pred_check_branch
          %248 = sbr.rel (%p246) target = $region20
        $region19: #{tpu_custom_call.1} parent=11 // pred_region
          _
        $region20: #{tpu_custom_call.1} parent=11 // pred_fallthru
          _
        // Predicated region
        $region21: #{tpu_custom_call.1} parent=11 // pred_check
          %p249 = pneg %p123
        $region22: #{tpu_custom_call.1} parent=11 // pred_check_branch
          %251 = sbr.rel (%p249) target = $region24
        $region23: #{tpu_custom_call.1} parent=11 // pred_region
          _
        $region24: #{tpu_custom_call.1} parent=11 // pred_fallthru
          _
        // Predicated region
        $region25: #{tpu_custom_call.1} parent=11 // pred_check
          %p252 = pneg %p144
        $region26: #{tpu_custom_call.1} parent=11 // pred_check_branch
          %254 = sbr.rel (%p252) target = $region28
        $region27: #{tpu_custom_call.1} parent=11 // pred_region
          _
        $region28: #{tpu_custom_call.1} parent=11 // pred_fallthru
          _
      $region12: #{tpu_custom_call.1} parent=5 // pred_fallthru
        _
      %p255 = scmp.lt.s32.totalorder %s20, 2
      // Predicated region
      $region29: #{tpu_custom_call.1} parent=5 // pred_check
        %p256 = pneg %p255
      $region30: #{tpu_custom_call.1} parent=5 // pred_check_branch
        %258 = sbr.rel (%p256) target = $region32
      $region31: #{tpu_custom_call.1} parent=5 // pred_region
        // Predicated region
        $region33: #{tpu_custom_call.1} parent=31 // pred_check
          %p259 = pneg %p54
        $region34: #{tpu_custom_call.1} parent=31 // pred_check_branch
          %261 = sbr.rel (%p259) target = $region36
        $region35: #{tpu_custom_call.1} parent=31 // pred_region
          %s262 = smul.u32 2, %s28
          %p263 = scmp.lt.s32.totalorder %s27, 1
          %s264 = scalar_select %p263, %s27, 1
          %p265 = scmp.lt.s32.totalorder %s262, 1
          %s266 = scalar_select %p265, %s262, 1
          %s267 = smul.addr %s264, 2
          %s268 = sadd.s32 %s266, %s267
          %s269 = smul.addr %s268, 4
          %s270 = scalar_lea.vmem %s0, %s269
          %s271 = smul.u32 2, %s28
        $region36: #{tpu_custom_call.1} parent=31 // pred_fallthru
          _
      $region32: #{tpu_custom_call.1} parent=5 // pred_fallthru
        _
      %p272 = scmp.le.s32.totalorder 1, %s20
      %p273 = scmp.lt.s32.totalorder %s20, 3
      %p274 = pnand %p272, %p273
      %p275 = pneg %p274
      // Predicated region
      $region37: #{tpu_custom_call.1} parent=5 // pred_check
        _
      $region38: #{tpu_custom_call.1} parent=5 // pred_check_branch
        %277 = sbr.rel (%p274) target = $region40
      $region39: #{tpu_custom_call.1} parent=5 // pred_region
        %s278 = ssub.s32 %s20, 1
        %s279 = smul.u32 2, %s30
        %p280 = scmp.lt.s32.totalorder %s29, 1
        %s281 = scalar_select %p280, %s29, 1
        %p282 = scmp.lt.s32.totalorder %s279, 1
        %s283 = scalar_select %p282, %s279, 1
        %s284 = smul.addr %s281, 2
        %s285 = sadd.s32 %s283, %s284
        %s286 = smul.addr %s285, 4
        %s287 = scalar_lea.vmem %s0, %s286
        %p288 = pneg %p60
        %p289 = pneg %p57
        %p290 = pneg %p81
        %p291 = pneg %p78
        %p292 = pneg %p102
        %p293 = pneg %p99
        %p294 = pneg %p123
        %p295 = pneg %p120
        %p296 = pneg %p144
        %p297 = pneg %p141
        %p298 = pneg %p172
        %p299 = pneg %p169
        %s300 = sand.u32 %s159, 1
        %s301 = scalar_lea.sflag [#allocation3], %s300
        %s302 = sand.u32 %s159, 1
        %s303 = smul.addr %s302, 128
        %s304 = scalar_lea.vmem [#allocation2], %s303
        %p305 = pneg %p200
        %p306 = pneg %p197
        %s307 = sand.u32 %s25, 1
        %s308 = scalar_lea.sflag [#allocation5], %s307
        %s309 = sand.u32 %s187, 1
        %s310 = smul.addr %s309, 128
        %s311 = scalar_lea.vmem [#allocation4], %s310
        %p312 = pneg %p228
        %p313 = pneg %p225
        %s314 = sand.u32 %s25, 1
        %s315 = scalar_lea.sflag [#allocation5], %s314
        %s316 = sand.u32 %s215, 1
        %s317 = smul.addr %s316, 128
        %s318 = scalar_lea.vmem [#allocation6], %s317
        %s319 = smul.u32 2, %s30
        %p320 = scmp.lt.s32.totalorder %s29, 1
        %s321 = scalar_select %p320, %s29, 1
        %p322 = scmp.lt.s32.totalorder %s319, 1
        %s323 = scalar_select %p322, %s319, 1
        %s324 = smul.addr %s321, 2
        %s325 = sadd.s32 %s323, %s324
        %s326 = smul.addr %s325, 4
        %s327 = scalar_lea.vmem %s0, %s326
        %s328 = smul.u32 2, %s30
        %s329 = smul.u32 32, %s30
        %s330 = smul.u32 2, %s30
        %s331 = smul.u32 32, %s30
        %v332 = vld [vmem:[%s327] sm:$0xff]
        %v333 = vld [vmem:[%s1] sm:$0xff]
        %v334 = vld [vmem:[%s1 + $0x8] sm:$0xff]
        %v335 = vld [vmem:[%s1 + $0x10] sm:$0xff]
        %v336 = vld [vmem:[%s1 + $0x18] sm:$0xff]
        %v337 = vld [vmem:[%s1 + $0x20] sm:$0xff]
        %v338 = vld [vmem:[%s1 + $0x28] sm:$0xff]
        %v339 = vld [vmem:[%s1 + $0x30] sm:$0xff]
        %v340 = vld [vmem:[%s1 + $0x38] sm:$0xff]
        %v341 = vld [vmem:[%s1 + $0x40] sm:$0xff]
        %v342 = vld [vmem:[%s1 + $0x48] sm:$0xff]
        %v343 = vld [vmem:[%s1 + $0x50] sm:$0xff]
        %v344 = vld [vmem:[%s1 + $0x58] sm:$0xff]
        %v345 = vld [vmem:[%s1 + $0x60] sm:$0xff]
        %v346 = vld [vmem:[%s1 + $0x68] sm:$0xff]
        %v347 = vld [vmem:[%s1 + $0x70] sm:$0xff]
        %v348 = vld [vmem:[%s1 + $0x78] sm:$0xff]
        %v349 = vld [vmem:[%s2] sm:$0xff]
        %v350 = vld [vmem:[%s2 + $0x8] sm:$0xff]
        %v351 = vld [vmem:[%s2 + $0x10] sm:$0xff]
        %v352 = vld [vmem:[%s2 + $0x18] sm:$0xff]
        %v353 = vld [vmem:[%s2 + $0x20] sm:$0xff]
        %v354 = vld [vmem:[%s2 + $0x28] sm:$0xff]
        %v355 = vld [vmem:[%s2 + $0x30] sm:$0xff]
        %v356 = vld [vmem:[%s2 + $0x38] sm:$0xff]
        %v357 = vld [vmem:[%s2 + $0x40] sm:$0xff]
        %v358 = vld [vmem:[%s2 + $0x48] sm:$0xff]
        %v359 = vld [vmem:[%s2 + $0x50] sm:$0xff]
        %v360 = vld [vmem:[%s2 + $0x58] sm:$0xff]
        %v361 = vld [vmem:[%s2 + $0x60] sm:$0xff]
        %v362 = vld [vmem:[%s2 + $0x68] sm:$0xff]
        %v363 = vld [vmem:[%s2 + $0x70] sm:$0xff]
        %v364 = vld [vmem:[%s2 + $0x78] sm:$0xff]
        %366 = vset.pattern.permute.xlu0 0
        %367 = vperm.xlu0 %366, %v349
        %v368 = vpop.permute.xlu0 %367
        %371 = vset.pattern.permute.xlu0 0
        %372 = vperm.xlu0 %371, %v350
        %v373 = vpop.permute.xlu0 %372
        %376 = vset.pattern.permute.xlu0 0
        %377 = vperm.xlu0 %376, %v351
        %v378 = vpop.permute.xlu0 %377
        %381 = vset.pattern.permute.xlu0 0
        %382 = vperm.xlu0 %381, %v352
        %v383 = vpop.permute.xlu0 %382
        %386 = vset.pattern.permute.xlu0 0
        %387 = vperm.xlu0 %386, %v353
        %v388 = vpop.permute.xlu0 %387
        %391 = vset.pattern.permute.xlu0 0
        %392 = vperm.xlu0 %391, %v354
        %v393 = vpop.permute.xlu0 %392
        %396 = vset.pattern.permute.xlu0 0
        %397 = vperm.xlu0 %396, %v355
        %v398 = vpop.permute.xlu0 %397
        %401 = vset.pattern.permute.xlu0 0
        %402 = vperm.xlu0 %401, %v356
        %v403 = vpop.permute.xlu0 %402
        %406 = vset.pattern.permute.xlu0 0
        %407 = vperm.xlu0 %406, %v357
        %v408 = vpop.permute.xlu0 %407
        %411 = vset.pattern.permute.xlu0 0
        %412 = vperm.xlu0 %411, %v358
        %v413 = vpop.permute.xlu0 %412
        %416 = vset.pattern.permute.xlu0 0
        %417 = vperm.xlu0 %416, %v359
        %v418 = vpop.permute.xlu0 %417
        %421 = vset.pattern.permute.xlu0 0
        %422 = vperm.xlu0 %421, %v360
        %v423 = vpop.permute.xlu0 %422
        %426 = vset.pattern.permute.xlu0 0
        %427 = vperm.xlu0 %426, %v361
        %v428 = vpop.permute.xlu0 %427
        %431 = vset.pattern.permute.xlu0 0
        %432 = vperm.xlu0 %431, %v362
        %v433 = vpop.permute.xlu0 %432
        %436 = vset.pattern.permute.xlu0 0
        %437 = vperm.xlu0 %436, %v363
        %v438 = vpop.permute.xlu0 %437
        %441 = vset.pattern.permute.xlu0 0
        %442 = vperm.xlu0 %441, %v364
        %v443 = vpop.permute.xlu0 %442
        %v446 = vcombine.high %v332, %v332
        %vm447 = vcmask 31744
        %v449 = vsel %vm447, %v333, 0
        %v452 = vsel %vm447, %v334, 0
        %v455 = vsel %vm447, %v335, 0
        %v458 = vsel %vm447, %v336, 0
        %v461 = vsel %vm447, %v337, 0
        %v464 = vsel %vm447, %v338, 0
        %v467 = vsel %vm447, %v339, 0
        %v470 = vsel %vm447, %v340, 0
        %v473 = vsel %vm447, %v341, 0
        %v476 = vsel %vm447, %v342, 0
        %v479 = vsel %vm447, %v343, 0
        %v482 = vsel %vm447, %v344, 0
        %v485 = vsel %vm447, %v345, 0
        %v488 = vsel %vm447, %v346, 0
        %v491 = vsel %vm447, %v347, 0
        %v494 = vsel %vm447, %v348, 0
        %vm496 = vcmask 1043456
        %v497 = vsel %vm496, %v332, 0
        %v499 = vsel %vm496, %v446, 0
        %501 = vmatprep.subr.mxu0 %v499
        %502 = vmatpush1.msra.mxu0 %v497
        %503 = vmatprep.subr.mxu0 0.0
        %504 = vmatpush1.msra.mxu0 0.0
        %505 = vmatprep.subr.mxu0 0.0
        %506 = vmatpush1.msra.mxu0 0.0
        %507 = vmatprep.subr.mxu0 0.0
        %508 = vmatpush1.msra.mxu0 0.0
        %509 = vmatprep.subr.mxu0 0.0
        %510 = vmatpush1.msra.mxu0 0.0
        %511 = vmatprep.subr.mxu0 0.0
        %512 = vmatpush1.msra.mxu0 0.0
        %513 = vmatprep.subr.mxu0 0.0
        %514 = vmatpush1.msra.mxu0 0.0
        %515 = vmatprep.subr.mxu0 0.0
        %516 = vmatpush1.msra.mxu0 0.0
        %517 = vmatprep.subr.mxu0 0.0
        %518 = vmatpush1.msra.mxu0 0.0
        %519 = vmatprep.subr.mxu0 0.0
        %520 = vmatpush1.msra.mxu0 0.0
        %521 = vmatprep.subr.mxu0 0.0
        %522 = vmatpush1.msra.mxu0 0.0
        %523 = vmatprep.subr.mxu0 0.0
        %524 = vmatpush1.msra.mxu0 0.0
        %525 = vmatprep.subr.mxu0 0.0
        %526 = vmatpush1.msra.mxu0 0.0
        %527 = vmatprep.subr.mxu0 0.0
        %528 = vmatpush1.msra.mxu0 0.0
        %529 = vmatprep.subr.mxu0 0.0
        %530 = vmatpush1.msra.mxu0 0.0
        %531 = vmatprep.subr.mxu0 0.0
        %532 = vmatpush1.msra.mxu0 0.0
        %533 = vmatprep.subr.mxu0 0.0
        %534 = vmatpush1.msra.mxu0 0.0
        %535 = vmatprep.subr.mxu0 0.0
        %536 = vmatpush1.msra.mxu0 0.0
        %537 = vmatprep.subr.mxu0 0.0
        %538 = vmatpush1.msra.mxu0 0.0
        %539 = vmatprep.subr.mxu0 0.0
        %540 = vmatpush1.msra.mxu0 0.0
        %541 = vmatprep.subr.mxu0 0.0
        %542 = vmatpush1.msra.mxu0 0.0
        %543 = vmatprep.subr.mxu0 0.0
        %544 = vmatpush1.msra.mxu0 0.0
        %545 = vmatprep.subr.mxu0 0.0
        %546 = vmatpush1.msra.mxu0 0.0
        %547 = vmatprep.subr.mxu0 0.0
        %548 = vmatpush1.msra.mxu0 0.0
        %549 = vmatprep.subr.mxu0 0.0
        %550 = vmatpush1.msra.mxu0 0.0
        %551 = vmatprep.subr.mxu0 0.0
        %552 = vmatpush1.msra.mxu0 0.0
        %553 = vmatprep.subr.mxu0 0.0
        %554 = vmatpush1.msra.mxu0 0.0
        %555 = vmatprep.subr.mxu0 0.0
        %556 = vmatpush1.msra.mxu0 0.0
        %557 = vmatprep.subr.mxu0 0.0
        %558 = vmatpush1.msra.mxu0 0.0
        %559 = vmatprep.subr.mxu0 0.0
        %560 = vmatpush1.msra.mxu0 0.0
        %561 = vmatprep.subr.mxu0 0.0
        %562 = vmatpush1.msra.mxu0 0.0
        %563 = vmatprep.subr.mxu0 0.0
        %564 = vmatpush1.msra.mxu0 0.0
        %565 = vmatprep.mubr.f32.mxu0 0.0
        %566 = vmatmul.mubr.f32.gmra.mrb[0].mxu0 %v449
        %v567 = vpop.f32.mrb[0].mxu0
        %v568 = vadd.f32 %v368, %v567
        %v569 = vpop.f32.mrb[0].mxu0
        %v570 = vadd.f32 %v368, %v569
        %571 = vmatprep.mubr.f32.mxu0 0.0
        %572 = vmatmul.mubr.f32.gmra.mrb[0].mxu0 %v452
        %v573 = vpop.f32.mrb[0].mxu0
        %v574 = vadd.f32 %v373, %v573
        %v575 = vpop.f32.mrb[0].mxu0
        %v576 = vadd.f32 %v373, %v575
        %577 = vmatprep.mubr.f32.mxu0 0.0
        %578 = vmatmul.mubr.f32.gmra.mrb[0].mxu0 %v455
        %v579 = vpop.f32.mrb[0].mxu0
        %v580 = vadd.f32 %v378, %v579
        %v581 = vpop.f32.mrb[0].mxu0
        %v582 = vadd.f32 %v378, %v581
        %583 = vmatprep.mubr.f32.mxu0 0.0
        %584 = vmatmul.mubr.f32.gmra.mrb[0].mxu0 %v458
        %v585 = vpop.f32.mrb[0].mxu0
        %v586 = vadd.f32 %v383, %v585
        %v587 = vpop.f32.mrb[0].mxu0
        %v588 = vadd.f32 %v383, %v587
        %589 = vmatprep.mubr.f32.mxu0 0.0
        %590 = vmatmul.mubr.f32.gmra.mrb[0].mxu0 %v461
        %v591 = vpop.f32.mrb[0].mxu0
        %v592 = vadd.f32 %v388, %v591
        %v593 = vpop.f32.mrb[0].mxu0
        %v594 = vadd.f32 %v388, %v593
        %595 = vmatprep.mubr.f32.mxu0 0.0
        %596 = vmatmul.mubr.f32.gmra.mrb[0].mxu0 %v464
        %v597 = vpop.f32.mrb[0].mxu0
        %v598 = vadd.f32 %v393, %v597
        %v599 = vpop.f32.mrb[0].mxu0
        %v600 = vadd.f32 %v393, %v599
        %601 = vmatprep.mubr.f32.mxu0 0.0
        %602 = vmatmul.mubr.f32.gmra.mrb[0].mxu0 %v467
        %v603 = vpop.f32.mrb[0].mxu0
        %v604 = vadd.f32 %v398, %v603
        %v605 = vpop.f32.mrb[0].mxu0
        %v606 = vadd.f32 %v398, %v605
        %607 = vmatprep.mubr.f32.mxu0 0.0
        %608 = vmatmul.mubr.f32.gmra.mrb[0].mxu0 %v470
        %v609 = vpop.f32.mrb[0].mxu0
        %v610 = vadd.f32 %v403, %v609
        %v611 = vpop.f32.mrb[0].mxu0
        %v612 = vadd.f32 %v403, %v611
        %613 = vmatprep.mubr.f32.mxu0 0.0
        %614 = vmatmul.mubr.f32.gmra.mrb[0].mxu0 %v473
        %v615 = vpop.f32.mrb[0].mxu0
        %v616 = vadd.f32 %v408, %v615
        %v617 = vpop.f32.mrb[0].mxu0
        %v618 = vadd.f32 %v408, %v617
        %619 = vmatprep.mubr.f32.mxu0 0.0
        %620 = vmatmul.mubr.f32.gmra.mrb[0].mxu0 %v476
        %v621 = vpop.f32.mrb[0].mxu0
        %v622 = vadd.f32 %v413, %v621
        %v623 = vpop.f32.mrb[0].mxu0
        %v624 = vadd.f32 %v413, %v623
        %625 = vmatprep.mubr.f32.mxu0 0.0
        %626 = vmatmul.mubr.f32.gmra.mrb[0].mxu0 %v479
        %v627 = vpop.f32.mrb[0].mxu0
        %v628 = vadd.f32 %v418, %v627
        %v629 = vpop.f32.mrb[0].mxu0
        %v630 = vadd.f32 %v418, %v629
        %631 = vmatprep.mubr.f32.mxu0 0.0
        %632 = vmatmul.mubr.f32.gmra.mrb[0].mxu0 %v482
        %v633 = vpop.f32.mrb[0].mxu0
        %v634 = vadd.f32 %v423, %v633
        %v635 = vpop.f32.mrb[0].mxu0
        %v636 = vadd.f32 %v423, %v635
        %637 = vmatprep.mubr.f32.mxu0 0.0
        %638 = vmatmul.mubr.f32.gmra.mrb[0].mxu0 %v485
        %v639 = vpop.f32.mrb[0].mxu0
        %v640 = vadd.f32 %v428, %v639
        %v641 = vpop.f32.mrb[0].mxu0
        %v642 = vadd.f32 %v428, %v641
        %643 = vmatprep.mubr.f32.mxu0 0.0
        %644 = vmatmul.mubr.f32.gmra.mrb[0].mxu0 %v488
        %v645 = vpop.f32.mrb[0].mxu0
        %v646 = vadd.f32 %v433, %v645
        %v647 = vpop.f32.mrb[0].mxu0
        %v648 = vadd.f32 %v433, %v647
        %649 = vmatprep.mubr.f32.mxu0 0.0
        %650 = vmatmul.mubr.f32.gmra.mrb[0].mxu0 %v491
        %v651 = vpop.f32.mrb[0].mxu0
        %v652 = vadd.f32 %v438, %v651
        %v653 = vpop.f32.mrb[0].mxu0
        %v654 = vadd.f32 %v438, %v653
        %655 = vmatprep.mubr.f32.mxu0 0.0
        %656 = vmatmul.mubr.f32.gmra.mrb[0].mxu0 %v494
        %v657 = vpop.f32.mrb[0].mxu0
        %v658 = vadd.f32 %v443, %v657
        %v659 = vpop.f32.mrb[0].mxu0
        %v660 = vadd.f32 %v443, %v659
        %661 = vdwg.mxu0
        %v662 = vld [vmem:[%s3] sm:$0xff]
        %v663 = vld [vmem:[%s3 + $0x8] sm:$0xff]
        %v664 = vld [vmem:[%s3 + $0x10] sm:$0xff]
        %v665 = vld [vmem:[%s3 + $0x18] sm:$0xff]
        %v666 = vld [vmem:[%s3 + $0x20] sm:$0xff]
        %v667 = vld [vmem:[%s3 + $0x28] sm:$0xff]
        %v668 = vld [vmem:[%s3 + $0x30] sm:$0xff]
        %v669 = vld [vmem:[%s3 + $0x38] sm:$0xff]
        %v670 = vld [vmem:[%s3 + $0x40] sm:$0xff]
        %v671 = vld [vmem:[%s3 + $0x48] sm:$0xff]
        %v672 = vld [vmem:[%s3 + $0x50] sm:$0xff]
        %v673 = vld [vmem:[%s3 + $0x58] sm:$0xff]
        %v674 = vld [vmem:[%s3 + $0x60] sm:$0xff]
        %v675 = vld [vmem:[%s3 + $0x68] sm:$0xff]
        %v676 = vld [vmem:[%s3 + $0x70] sm:$0xff]
        %v677 = vld [vmem:[%s3 + $0x78] sm:$0xff]
        %v678 = vld [vmem:[%s4] sm:$0xff]
        %v679 = vld [vmem:[%s4 + $0x8] sm:$0xff]
        %v680 = vld [vmem:[%s4 + $0x10] sm:$0xff]
        %v681 = vld [vmem:[%s4 + $0x18] sm:$0xff]
        %v682 = vld [vmem:[%s4 + $0x20] sm:$0xff]
        %v683 = vld [vmem:[%s4 + $0x28] sm:$0xff]
        %v684 = vld [vmem:[%s4 + $0x30] sm:$0xff]
        %v685 = vld [vmem:[%s4 + $0x38] sm:$0xff]
        %v686 = vld [vmem:[%s4 + $0x40] sm:$0xff]
        %v687 = vld [vmem:[%s4 + $0x48] sm:$0xff]
        %v688 = vld [vmem:[%s4 + $0x50] sm:$0xff]
        %v689 = vld [vmem:[%s4 + $0x58] sm:$0xff]
        %v690 = vld [vmem:[%s4 + $0x60] sm:$0xff]
        %v691 = vld [vmem:[%s4 + $0x68] sm:$0xff]
        %v692 = vld [vmem:[%s4 + $0x70] sm:$0xff]
        %v693 = vld [vmem:[%s4 + $0x78] sm:$0xff]
        %695 = vset.pattern.permute.xlu0 0
        %696 = vperm.xlu0 %695, %v678
        %v697 = vpop.permute.xlu0 %696
        %700 = vset.pattern.permute.xlu0 0
        %701 = vperm.xlu0 %700, %v679
        %v702 = vpop.permute.xlu0 %701
        %705 = vset.pattern.permute.xlu0 0
        %706 = vperm.xlu0 %705, %v680
        %v707 = vpop.permute.xlu0 %706
        %710 = vset.pattern.permute.xlu0 0
        %711 = vperm.xlu0 %710, %v681
        %v712 = vpop.permute.xlu0 %711
        %715 = vset.pattern.permute.xlu0 0
        %716 = vperm.xlu0 %715, %v682
        %v717 = vpop.permute.xlu0 %716
        %720 = vset.pattern.permute.xlu0 0
        %721 = vperm.xlu0 %720, %v683
        %v722 = vpop.permute.xlu0 %721
        %725 = vset.pattern.permute.xlu0 0
        %726 = vperm.xlu0 %725, %v684
        %v727 = vpop.permute.xlu0 %726
        %730 = vset.pattern.permute.xlu0 0
        %731 = vperm.xlu0 %730, %v685
        %v732 = vpop.permute.xlu0 %731
        %735 = vset.pattern.permute.xlu0 0
        %736 = vperm.xlu0 %735, %v686
        %v737 = vpop.permute.xlu0 %736
        %740 = vset.pattern.permute.xlu0 0
        %741 = vperm.xlu0 %740, %v687
        %v742 = vpop.permute.xlu0 %741
        %745 = vset.pattern.permute.xlu0 0
        %746 = vperm.xlu0 %745, %v688
        %v747 = vpop.permute.xlu0 %746
        %750 = vset.pattern.permute.xlu0 0
        %751 = vperm.xlu0 %750, %v689
        %v752 = vpop.permute.xlu0 %751
        %755 = vset.pattern.permute.xlu0 0
        %756 = vperm.xlu0 %755, %v690
        %v757 = vpop.permute.xlu0 %756
        %760 = vset.pattern.permute.xlu0 0
        %761 = vperm.xlu0 %760, %v691
        %v762 = vpop.permute.xlu0 %761
        %765 = vset.pattern.permute.xlu0 0
        %766 = vperm.xlu0 %765, %v692
        %v767 = vpop.permute.xlu0 %766
        %770 = vset.pattern.permute.xlu0 0
        %771 = vperm.xlu0 %770, %v693
        %v772 = vpop.permute.xlu0 %771
        %v775 = vsel %vm447, %v662, 0
        %v778 = vsel %vm447, %v663, 0
        %v781 = vsel %vm447, %v664, 0
        %v784 = vsel %vm447, %v665, 0
        %v787 = vsel %vm447, %v666, 0
        %v790 = vsel %vm447, %v667, 0
        %v793 = vsel %vm447, %v668, 0
        %v796 = vsel %vm447, %v669, 0
        %v799 = vsel %vm447, %v670, 0
        %v802 = vsel %vm447, %v671, 0
        %v805 = vsel %vm447, %v672, 0
        %v808 = vsel %vm447, %v673, 0
        %v811 = vsel %vm447, %v674, 0
        %v814 = vsel %vm447, %v675, 0
        %v817 = vsel %vm447, %v676, 0
        %v820 = vsel %vm447, %v677, 0
        %822 = vmatprep.subr.mxu0 %v499
        %823 = vmatpush1.msra.mxu0 %v497
        %824 = vmatprep.subr.mxu0 0.0
        %825 = vmatpush1.msra.mxu0 0.0
        %826 = vmatprep.subr.mxu0 0.0
        %827 = vmatpush1.msra.mxu0 0.0
        %828 = vmatprep.subr.mxu0 0.0
        %829 = vmatpush1.msra.mxu0 0.0
        %830 = vmatprep.subr.mxu0 0.0
        %831 = vmatpush1.msra.mxu0 0.0
        %832 = vmatprep.subr.mxu0 0.0
        %833 = vmatpush1.msra.mxu0 0.0
        %834 = vmatprep.subr.mxu0 0.0
        %835 = vmatpush1.msra.mxu0 0.0
        %836 = vmatprep.subr.mxu0 0.0
        %837 = vmatpush1.msra.mxu0 0.0
        %838 = vmatprep.subr.mxu0 0.0
        %839 = vmatpush1.msra.mxu0 0.0
        %840 = vmatprep.subr.mxu0 0.0
        %841 = vmatpush1.msra.mxu0 0.0
        %842 = vmatprep.subr.mxu0 0.0
        %843 = vmatpush1.msra.mxu0 0.0
        %844 = vmatprep.subr.mxu0 0.0
        %845 = vmatpush1.msra.mxu0 0.0
        %846 = vmatprep.subr.mxu0 0.0
        %847 = vmatpush1.msra.mxu0 0.0
        %848 = vmatprep.subr.mxu0 0.0
        %849 = vmatpush1.msra.mxu0 0.0
        %850 = vmatprep.subr.mxu0 0.0
        %851 = vmatpush1.msra.mxu0 0.0
        %852 = vmatprep.subr.mxu0 0.0
        %853 = vmatpush1.msra.mxu0 0.0
        %854 = vmatprep.subr.mxu0 0.0
        %855 = vmatpush1.msra.mxu0 0.0
        %856 = vmatprep.subr.mxu0 0.0
        %857 = vmatpush1.msra.mxu0 0.0
        %858 = vmatprep.subr.mxu0 0.0
        %859 = vmatpush1.msra.mxu0 0.0
        %860 = vmatprep.subr.mxu0 0.0
        %861 = vmatpush1.msra.mxu0 0.0
        %862 = vmatprep.subr.mxu0 0.0
        %863 = vmatpush1.msra.mxu0 0.0
        %864 = vmatprep.subr.mxu0 0.0
        %865 = vmatpush1.msra.mxu0 0.0
        %866 = vmatprep.subr.mxu0 0.0
        %867 = vmatpush1.msra.mxu0 0.0
        %868 = vmatprep.subr.mxu0 0.0
        %869 = vmatpush1.msra.mxu0 0.0
        %870 = vmatprep.subr.mxu0 0.0
        %871 = vmatpush1.msra.mxu0 0.0
        %872 = vmatprep.subr.mxu0 0.0
        %873 = vmatpush1.msra.mxu0 0.0
        %874 = vmatprep.subr.mxu0 0.0
        %875 = vmatpush1.msra.mxu0 0.0
        %876 = vmatprep.subr.mxu0 0.0
        %877 = vmatpush1.msra.mxu0 0.0
        %878 = vmatprep.subr.mxu0 0.0
        %879 = vmatpush1.msra.mxu0 0.0
        %880 = vmatprep.subr.mxu0 0.0
        %881 = vmatpush1.msra.mxu0 0.0
        %882 = vmatprep.subr.mxu0 0.0
        %883 = vmatpush1.msra.mxu0 0.0
        %884 = vmatprep.subr.mxu0 0.0
        %885 = vmatpush1.msra.mxu0 0.0
        %886 = vmatprep.mubr.f32.mxu0 0.0
        %887 = vmatmul.mubr.f32.gmra.mrb[0].mxu0 %v775
        %v888 = vpop.f32.mrb[0].mxu0
        %v889 = vadd.f32 %v697, %v888
        %v890 = vpop.f32.mrb[0].mxu0
        %v891 = vadd.f32 %v697, %v890
        %892 = vmatprep.mubr.f32.mxu0 0.0
        %893 = vmatmul.mubr.f32.gmra.mrb[0].mxu0 %v778
        %v894 = vpop.f32.mrb[0].mxu0
        %v895 = vadd.f32 %v702, %v894
        %v896 = vpop.f32.mrb[0].mxu0
        %v897 = vadd.f32 %v702, %v896
        %898 = vmatprep.mubr.f32.mxu0 0.0
        %899 = vmatmul.mubr.f32.gmra.mrb[0].mxu0 %v781
        %v900 = vpop.f32.mrb[0].mxu0
        %v901 = vadd.f32 %v707, %v900
        %v902 = vpop.f32.mrb[0].mxu0
        %v903 = vadd.f32 %v707, %v902
        %904 = vmatprep.mubr.f32.mxu0 0.0
        %905 = vmatmul.mubr.f32.gmra.mrb[0].mxu0 %v784
        %v906 = vpop.f32.mrb[0].mxu0
        %v907 = vadd.f32 %v712, %v906
        %v908 = vpop.f32.mrb[0].mxu0
        %v909 = vadd.f32 %v712, %v908
        %910 = vmatprep.mubr.f32.mxu0 0.0
        %911 = vmatmul.mubr.f32.gmra.mrb[0].mxu0 %v787
        %v912 = vpop.f32.mrb[0].mxu0
        %v913 = vadd.f32 %v717, %v912
        %v914 = vpop.f32.mrb[0].mxu0
        %v915 = vadd.f32 %v717, %v914
        %916 = vmatprep.mubr.f32.mxu0 0.0
        %917 = vmatmul.mubr.f32.gmra.mrb[0].mxu0 %v790
        %v918 = vpop.f32.mrb[0].mxu0
        %v919 = vadd.f32 %v722, %v918
        %v920 = vpop.f32.mrb[0].mxu0
        %v921 = vadd.f32 %v722, %v920
        %922 = vmatprep.mubr.f32.mxu0 0.0
        %923 = vmatmul.mubr.f32.gmra.mrb[0].mxu0 %v793
        %v924 = vpop.f32.mrb[0].mxu0
        %v925 = vadd.f32 %v727, %v924
        %v926 = vpop.f32.mrb[0].mxu0
        %v927 = vadd.f32 %v727, %v926
        %928 = vmatprep.mubr.f32.mxu0 0.0
        %929 = vmatmul.mubr.f32.gmra.mrb[0].mxu0 %v796
        %v930 = vpop.f32.mrb[0].mxu0
        %v931 = vadd.f32 %v732, %v930
        %v932 = vpop.f32.mrb[0].mxu0
        %v933 = vadd.f32 %v732, %v932
        %934 = vmatprep.mubr.f32.mxu0 0.0
        %935 = vmatmul.mubr.f32.gmra.mrb[0].mxu0 %v799
        %v936 = vpop.f32.mrb[0].mxu0
        %v937 = vadd.f32 %v737, %v936
        %v938 = vpop.f32.mrb[0].mxu0
        %v939 = vadd.f32 %v737, %v938
        %940 = vmatprep.mubr.f32.mxu0 0.0
        %941 = vmatmul.mubr.f32.gmra.mrb[0].mxu0 %v802
        %v942 = vpop.f32.mrb[0].mxu0
        %v943 = vadd.f32 %v742, %v942
        %v944 = vpop.f32.mrb[0].mxu0
        %v945 = vadd.f32 %v742, %v944
        %946 = vmatprep.mubr.f32.mxu0 0.0
        %947 = vmatmul.mubr.f32.gmra.mrb[0].mxu0 %v805
        %v948 = vpop.f32.mrb[0].mxu0
        %v949 = vadd.f32 %v747, %v948
        %v950 = vpop.f32.mrb[0].mxu0
        %v951 = vadd.f32 %v747, %v950
        %952 = vmatprep.mubr.f32.mxu0 0.0
        %953 = vmatmul.mubr.f32.gmra.mrb[0].mxu0 %v808
        %v954 = vpop.f32.mrb[0].mxu0
        %v955 = vadd.f32 %v752, %v954
        %v956 = vpop.f32.mrb[0].mxu0
        %v957 = vadd.f32 %v752, %v956
        %958 = vmatprep.mubr.f32.mxu0 0.0
        %959 = vmatmul.mubr.f32.gmra.mrb[0].mxu0 %v811
        %v960 = vpop.f32.mrb[0].mxu0
        %v961 = vadd.f32 %v757, %v960
        %v962 = vpop.f32.mrb[0].mxu0
        %v963 = vadd.f32 %v757, %v962
        %964 = vmatprep.mubr.f32.mxu0 0.0
        %965 = vmatmul.mubr.f32.gmra.mrb[0].mxu0 %v814
        %v966 = vpop.f32.mrb[0].mxu0
        %v967 = vadd.f32 %v762, %v966
        %v968 = vpop.f32.mrb[0].mxu0
        %v969 = vadd.f32 %v762, %v968
        %970 = vmatprep.mubr.f32.mxu0 0.0
        %971 = vmatmul.mubr.f32.gmra.mrb[0].mxu0 %v817
        %v972 = vpop.f32.mrb[0].mxu0
        %v973 = vadd.f32 %v767, %v972
        %v974 = vpop.f32.mrb[0].mxu0
        %v975 = vadd.f32 %v767, %v974
        %976 = vmatprep.mubr.f32.mxu0 0.0
        %977 = vmatmul.mubr.f32.gmra.mrb[0].mxu0 %v820
        %v978 = vpop.f32.mrb[0].mxu0
        %v979 = vadd.f32 %v772, %v978
        %v980 = vpop.f32.mrb[0].mxu0
        %v981 = vadd.f32 %v772, %v980
        %982 = vdwg.mxu0
        %v983 = vpack.c.bf16 %v574, %v568
        %v984 = vpack.c.bf16 %v576, %v570
        %v985 = vpack.c.bf16 %v586, %v580
        %v986 = vpack.c.bf16 %v588, %v582
        %v987 = vpack.c.bf16 %v598, %v592
        %v988 = vpack.c.bf16 %v600, %v594
        %v989 = vpack.c.bf16 %v610, %v604
        %v990 = vpack.c.bf16 %v612, %v606
        %v991 = vpack.c.bf16 %v622, %v616
        %v992 = vpack.c.bf16 %v624, %v618
        %v993 = vpack.c.bf16 %v634, %v628
        %v994 = vpack.c.bf16 %v636, %v630
        %v995 = vpack.c.bf16 %v646, %v640
        %v996 = vpack.c.bf16 %v648, %v642
        %v997 = vpack.c.bf16 %v658, %v652
        %v998 = vpack.c.bf16 %v660, %v654
        %v1015 = vunpack.c.l.b16 %v983
        %v1016 = vunpack.c.l.b16 %v984
        %v1017 = vunpack.c.h.b16 %v983
        %v1018 = vunpack.c.h.b16 %v984
        %v1019 = vunpack.c.l.b16 %v985
        %v1020 = vunpack.c.l.b16 %v986
        %v1021 = vunpack.c.h.b16 %v985
        %v1022 = vunpack.c.h.b16 %v986
        %v1023 = vunpack.c.l.b16 %v987
        %v1024 = vunpack.c.l.b16 %v988
        %v1025 = vunpack.c.h.b16 %v987
        %v1026 = vunpack.c.h.b16 %v988
        %v1027 = vunpack.c.l.b16 %v989
        %v1028 = vunpack.c.l.b16 %v990
        %v1029 = vunpack.c.h.b16 %v989
        %v1030 = vunpack.c.h.b16 %v990
        %v1031 = vunpack.c.l.b16 %v991
        %v1032 = vunpack.c.l.b16 %v992
        %v1033 = vunpack.c.h.b16 %v991
        %v1034 = vunpack.c.h.b16 %v992
        %v1035 = vunpack.c.l.b16 %v993
        %v1036 = vunpack.c.l.b16 %v994
        %v1037 = vunpack.c.h.b16 %v993
        %v1038 = vunpack.c.h.b16 %v994
        %v1039 = vunpack.c.l.b16 %v995
        %v1040 = vunpack.c.l.b16 %v996
        %v1041 = vunpack.c.h.b16 %v995
        %v1042 = vunpack.c.h.b16 %v996
        %v1043 = vunpack.c.l.b16 %v997
        %v1044 = vunpack.c.l.b16 %v998
        %v1045 = vunpack.c.h.b16 %v997
        %v1046 = vunpack.c.h.b16 %v998
        %v1047 = vpack.c.b16 %v1016, %v1015
        %v1048 = vpack.c.b16 %v1018, %v1017
        %v1049 = vpack.c.b16 %v1020, %v1019
        %v1050 = vpack.c.b16 %v1022, %v1021
        %v1051 = vpack.c.b16 %v1024, %v1023
        %v1052 = vpack.c.b16 %v1026, %v1025
        %v1053 = vpack.c.b16 %v1028, %v1027
        %v1054 = vpack.c.b16 %v1030, %v1029
        %v1055 = vpack.c.b16 %v1032, %v1031
        %v1056 = vpack.c.b16 %v1034, %v1033
        %v1057 = vpack.c.b16 %v1036, %v1035
        %v1058 = vpack.c.b16 %v1038, %v1037
        %v1059 = vpack.c.b16 %v1040, %v1039
        %v1060 = vpack.c.b16 %v1042, %v1041
        %v1061 = vpack.c.b16 %v1044, %v1043
        %v1062 = vpack.c.b16 %v1046, %v1045
        %1079 = vst [vmem:[%s311] sm:$0xff] %v1047
        %1080 = vst [vmem:[%s311 + $0x8] sm:$0xff] %v1048
        %1081 = vst [vmem:[%s311 + $0x10] sm:$0xff] %v1049
        %1082 = vst [vmem:[%s311 + $0x18] sm:$0xff] %v1050
        %1083 = vst [vmem:[%s311 + $0x20] sm:$0xff] %v1051
        %1084 = vst [vmem:[%s311 + $0x28] sm:$0xff] %v1052
        %1085 = vst [vmem:[%s311 + $0x30] sm:$0xff] %v1053
        %1086 = vst [vmem:[%s311 + $0x38] sm:$0xff] %v1054
        %1087 = vst [vmem:[%s311 + $0x40] sm:$0xff] %v1055
        %1088 = vst [vmem:[%s311 + $0x48] sm:$0xff] %v1056
        %1089 = vst [vmem:[%s311 + $0x50] sm:$0xff] %v1057
        %1090 = vst [vmem:[%s311 + $0x58] sm:$0xff] %v1058
        %1091 = vst [vmem:[%s311 + $0x60] sm:$0xff] %v1059
        %1092 = vst [vmem:[%s311 + $0x68] sm:$0xff] %v1060
        %1093 = vst [vmem:[%s311 + $0x70] sm:$0xff] %v1061
        %1094 = vst [vmem:[%s311 + $0x78] sm:$0xff] %v1062
        %1095 = vxpose.xlu0.b32.start [1/16] %v568, 128
        %1096 = vxpose.xlu0.b32.cont [2/16] %v574, 128
        %1097 = vxpose.xlu0.b32.cont [3/16] %v580, 128
        %1098 = vxpose.xlu0.b32.cont [4/16] %v586, 128
        %1099 = vxpose.xlu0.b32.cont [5/16] %v592, 128
        %1100 = vxpose.xlu0.b32.cont [6/16] %v598, 128
        %1101 = vxpose.xlu0.b32.cont [7/16] %v604, 128
        %1102 = vxpose.xlu0.b32.cont [8/16] %v610, 128
        %1103 = vxpose.xlu0.b32.cont [9/16] %v616, 128
        %1104 = vxpose.xlu0.b32.cont [10/16] %v622, 128
        %1105 = vxpose.xlu0.b32.cont [11/16] %v628, 128
        %1106 = vxpose.xlu0.b32.cont [12/16] %v634, 128
        %1107 = vxpose.xlu0.b32.cont [13/16] %v640, 128
        %1108 = vxpose.xlu0.b32.cont [14/16] %v646, 128
        %1109 = vxpose.xlu0.b32.cont [15/16] %v652, 128
        %1110 = vxpose.xlu0.b32.end [16/16] %v658, 128
        %v1111 = vpop.trf.xlu0
        %v1112 = vpop.trf.xlu0
        %v1113 = vpop.trf.xlu0
        %v1114 = vpop.trf.xlu0
        %v1115 = vpop.trf.xlu0
        %v1116 = vpop.trf.xlu0
        %v1117 = vpop.trf.xlu0
        %v1118 = vpop.trf.xlu0
        %v1119 = vpop.trf.xlu0
        %v1120 = vpop.trf.xlu0
        %v1121 = vpop.trf.xlu0
        %v1122 = vpop.trf.xlu0
        %v1123 = vpop.trf.xlu0
        %v1124 = vpop.trf.xlu0
        %v1125 = vpop.trf.xlu0
        %v1126 = vpop.trf.xlu0
        %1127 = vxpose.xlu0.b32.start [1/16] %v570, 128
        %1128 = vxpose.xlu0.b32.cont [2/16] %v576, 128
        %1129 = vxpose.xlu0.b32.cont [3/16] %v582, 128
        %1130 = vxpose.xlu0.b32.cont [4/16] %v588, 128
        %1131 = vxpose.xlu0.b32.cont [5/16] %v594, 128
        %1132 = vxpose.xlu0.b32.cont [6/16] %v600, 128
        %1133 = vxpose.xlu0.b32.cont [7/16] %v606, 128
        %1134 = vxpose.xlu0.b32.cont [8/16] %v612, 128
        %1135 = vxpose.xlu0.b32.cont [9/16] %v618, 128
        %1136 = vxpose.xlu0.b32.cont [10/16] %v624, 128
        %1137 = vxpose.xlu0.b32.cont [11/16] %v630, 128
        %1138 = vxpose.xlu0.b32.cont [12/16] %v636, 128
        %1139 = vxpose.xlu0.b32.cont [13/16] %v642, 128
        %1140 = vxpose.xlu0.b32.cont [14/16] %v648, 128
        %1141 = vxpose.xlu0.b32.cont [15/16] %v654, 128
        %1142 = vxpose.xlu0.b32.end [16/16] %v660, 128
        %v1143 = vpop.trf.xlu0
        %v1144 = vpop.trf.xlu0
        %v1145 = vpop.trf.xlu0
        %v1146 = vpop.trf.xlu0
        %v1147 = vpop.trf.xlu0
        %v1148 = vpop.trf.xlu0
        %v1149 = vpop.trf.xlu0
        %v1150 = vpop.trf.xlu0
        %v1151 = vpop.trf.xlu0
        %v1152 = vpop.trf.xlu0
        %v1153 = vpop.trf.xlu0
        %v1154 = vpop.trf.xlu0
        %v1155 = vpop.trf.xlu0
        %v1156 = vpop.trf.xlu0
        %v1157 = vpop.trf.xlu0
        %v1158 = vpop.trf.xlu0
        %v1159 = vpack.c.bf16 %v1112, %v1111
        %v1160 = vpack.c.bf16 %v1114, %v1113
        %v1161 = vpack.c.bf16 %v1116, %v1115
        %v1162 = vpack.c.bf16 %v1118, %v1117
        %v1163 = vpack.c.bf16 %v1120, %v1119
        %v1164 = vpack.c.bf16 %v1122, %v1121
        %v1165 = vpack.c.bf16 %v1124, %v1123
        %v1166 = vpack.c.bf16 %v1126, %v1125
        %v1167 = vpack.c.bf16 %v1144, %v1143
        %v1168 = vpack.c.bf16 %v1146, %v1145
        %v1169 = vpack.c.bf16 %v1148, %v1147
        %v1170 = vpack.c.bf16 %v1150, %v1149
        %v1171 = vpack.c.bf16 %v1152, %v1151
        %v1172 = vpack.c.bf16 %v1154, %v1153
        %v1173 = vpack.c.bf16 %v1156, %v1155
        %v1174 = vpack.c.bf16 %v1158, %v1157
        %v1191 = vunpack.c.l.b16 %v1159
        %v1192 = vunpack.c.h.b16 %v1159
        %v1193 = vunpack.c.l.b16 %v1160
        %v1194 = vunpack.c.h.b16 %v1160
        %v1195 = vunpack.c.l.b16 %v1161
        %v1196 = vunpack.c.h.b16 %v1161
        %v1197 = vunpack.c.l.b16 %v1162
        %v1198 = vunpack.c.h.b16 %v1162
        %v1199 = vunpack.c.l.b16 %v1163
        %v1200 = vunpack.c.h.b16 %v1163
        %v1201 = vunpack.c.l.b16 %v1164
        %v1202 = vunpack.c.h.b16 %v1164
        %v1203 = vunpack.c.l.b16 %v1165
        %v1204 = vunpack.c.h.b16 %v1165
        %v1205 = vunpack.c.l.b16 %v1166
        %v1206 = vunpack.c.h.b16 %v1166
        %v1207 = vunpack.c.l.b16 %v1167
        %v1208 = vunpack.c.h.b16 %v1167
        %v1209 = vunpack.c.l.b16 %v1168
        %v1210 = vunpack.c.h.b16 %v1168
        %v1211 = vunpack.c.l.b16 %v1169
        %v1212 = vunpack.c.h.b16 %v1169
        %v1213 = vunpack.c.l.b16 %v1170
        %v1214 = vunpack.c.h.b16 %v1170
        %v1215 = vunpack.c.l.b16 %v1171
        %v1216 = vunpack.c.h.b16 %v1171
        %v1217 = vunpack.c.l.b16 %v1172
        %v1218 = vunpack.c.h.b16 %v1172
        %v1219 = vunpack.c.l.b16 %v1173
        %v1220 = vunpack.c.h.b16 %v1173
        %v1221 = vunpack.c.l.b16 %v1174
        %v1222 = vunpack.c.h.b16 %v1174
        %v1223 = vpack.c.b16 %v1191, %v1191
        %v1224 = vpack.c.b16 %v1192, %v1192
        %v1225 = vpack.c.b16 %v1193, %v1193
        %v1226 = vpack.c.b16 %v1194, %v1194
        %v1227 = vpack.c.b16 %v1195, %v1195
        %v1228 = vpack.c.b16 %v1196, %v1196
        %v1229 = vpack.c.b16 %v1197, %v1197
        %v1230 = vpack.c.b16 %v1198, %v1198
        %v1231 = vpack.c.b16 %v1199, %v1199
        %v1232 = vpack.c.b16 %v1200, %v1200
        %v1233 = vpack.c.b16 %v1201, %v1201
        %v1234 = vpack.c.b16 %v1202, %v1202
        %v1235 = vpack.c.b16 %v1203, %v1203
        %v1236 = vpack.c.b16 %v1204, %v1204
        %v1237 = vpack.c.b16 %v1205, %v1205
        %v1238 = vpack.c.b16 %v1206, %v1206
        %v1239 = vpack.c.b16 %v1207, %v1207
        %v1240 = vpack.c.b16 %v1208, %v1208
        %v1241 = vpack.c.b16 %v1209, %v1209
        %v1242 = vpack.c.b16 %v1210, %v1210
        %v1243 = vpack.c.b16 %v1211, %v1211
        %v1244 = vpack.c.b16 %v1212, %v1212
        %v1245 = vpack.c.b16 %v1213, %v1213
        %v1246 = vpack.c.b16 %v1214, %v1214
        %v1247 = vpack.c.b16 %v1215, %v1215
        %v1248 = vpack.c.b16 %v1216, %v1216
        %v1249 = vpack.c.b16 %v1217, %v1217
        %v1250 = vpack.c.b16 %v1218, %v1218
        %v1251 = vpack.c.b16 %v1219, %v1219
        %v1252 = vpack.c.b16 %v1220, %v1220
        %v1253 = vpack.c.b16 %v1221, %v1221
        %v1254 = vpack.c.b16 %v1222, %v1222
        %1287 = vst [vmem:[%s304] sm:$0xf] %v1223
        %1288 = vst [vmem:[%s304 + $0x4] sm:$0xf] %v1224
        %1289 = vst [vmem:[%s304 + $0x8] sm:$0xf] %v1225
        %1290 = vst [vmem:[%s304 + $0xc] sm:$0xf] %v1226
        %1291 = vst [vmem:[%s304 + $0x10] sm:$0xf] %v1227
        %1292 = vst [vmem:[%s304 + $0x14] sm:$0xf] %v1228
        %1293 = vst [vmem:[%s304 + $0x18] sm:$0xf] %v1229
        %1294 = vst [vmem:[%s304 + $0x1c] sm:$0xf] %v1230
        %1295 = vst [vmem:[%s304 + $0x20] sm:$0xf] %v1231
        %1296 = vst [vmem:[%s304 + $0x24] sm:$0xf] %v1232
        %1297 = vst [vmem:[%s304 + $0x28] sm:$0xf] %v1233
        %1298 = vst [vmem:[%s304 + $0x2c] sm:$0xf] %v1234
        %1299 = vst [vmem:[%s304 + $0x30] sm:$0xf] %v1235
        %1300 = vst [vmem:[%s304 + $0x34] sm:$0xf] %v1236
        %1301 = vst [vmem:[%s304 + $0x38] sm:$0xf] %v1237
        %1302 = vst [vmem:[%s304 + $0x3c] sm:$0xf] %v1238
        %1303 = vst [vmem:[%s304 + $0x40] sm:$0xf] %v1239
        %1304 = vst [vmem:[%s304 + $0x44] sm:$0xf] %v1240
        %1305 = vst [vmem:[%s304 + $0x48] sm:$0xf] %v1241
        %1306 = vst [vmem:[%s304 + $0x4c] sm:$0xf] %v1242
        %1307 = vst [vmem:[%s304 + $0x50] sm:$0xf] %v1243
        %1308 = vst [vmem:[%s304 + $0x54] sm:$0xf] %v1244
        %1309 = vst [vmem:[%s304 + $0x58] sm:$0xf] %v1245
        %1310 = vst [vmem:[%s304 + $0x5c] sm:$0xf] %v1246
        %1311 = vst [vmem:[%s304 + $0x60] sm:$0xf] %v1247
        %1312 = vst [vmem:[%s304 + $0x64] sm:$0xf] %v1248
        %1313 = vst [vmem:[%s304 + $0x68] sm:$0xf] %v1249
        %1314 = vst [vmem:[%s304 + $0x6c] sm:$0xf] %v1250
        %1315 = vst [vmem:[%s304 + $0x70] sm:$0xf] %v1251
        %1316 = vst [vmem:[%s304 + $0x74] sm:$0xf] %v1252
        %1317 = vst [vmem:[%s304 + $0x78] sm:$0xf] %v1253
        %1318 = vst [vmem:[%s304 + $0x7c] sm:$0xf] %v1254
        %1319 = vxpose.xlu0.b32.start [1/16] %v889, 128
        %1320 = vxpose.xlu0.b32.cont [2/16] %v895, 128
        %1321 = vxpose.xlu0.b32.cont [3/16] %v901, 128
        %1322 = vxpose.xlu0.b32.cont [4/16] %v907, 128
        %1323 = vxpose.xlu0.b32.cont [5/16] %v913, 128
        %1324 = vxpose.xlu0.b32.cont [6/16] %v919, 128
        %1325 = vxpose.xlu0.b32.cont [7/16] %v925, 128
        %1326 = vxpose.xlu0.b32.cont [8/16] %v931, 128
        %1327 = vxpose.xlu0.b32.cont [9/16] %v937, 128
        %1328 = vxpose.xlu0.b32.cont [10/16] %v943, 128
        %1329 = vxpose.xlu0.b32.cont [11/16] %v949, 128
        %1330 = vxpose.xlu0.b32.cont [12/16] %v955, 128
        %1331 = vxpose.xlu0.b32.cont [13/16] %v961, 128
        %1332 = vxpose.xlu0.b32.cont [14/16] %v967, 128
        %1333 = vxpose.xlu0.b32.cont [15/16] %v973, 128
        %1334 = vxpose.xlu0.b32.end [16/16] %v979, 128
        %v1335 = vpop.trf.xlu0
        %v1336 = vpop.trf.xlu0
        %v1337 = vpop.trf.xlu0
        %v1338 = vpop.trf.xlu0
        %v1339 = vpop.trf.xlu0
        %v1340 = vpop.trf.xlu0
        %v1341 = vpop.trf.xlu0
        %v1342 = vpop.trf.xlu0
        %v1343 = vpop.trf.xlu0
        %v1344 = vpop.trf.xlu0
        %v1345 = vpop.trf.xlu0
        %v1346 = vpop.trf.xlu0
        %v1347 = vpop.trf.xlu0
        %v1348 = vpop.trf.xlu0
        %v1349 = vpop.trf.xlu0
        %v1350 = vpop.trf.xlu0
        %1351 = vxpose.xlu0.b32.start [1/16] %v891, 128
        %1352 = vxpose.xlu0.b32.cont [2/16] %v897, 128
        %1353 = vxpose.xlu0.b32.cont [3/16] %v903, 128
        %1354 = vxpose.xlu0.b32.cont [4/16] %v909, 128
        %1355 = vxpose.xlu0.b32.cont [5/16] %v915, 128
        %1356 = vxpose.xlu0.b32.cont [6/16] %v921, 128
        %1357 = vxpose.xlu0.b32.cont [7/16] %v927, 128
        %1358 = vxpose.xlu0.b32.cont [8/16] %v933, 128
        %1359 = vxpose.xlu0.b32.cont [9/16] %v939, 128
        %1360 = vxpose.xlu0.b32.cont [10/16] %v945, 128
        %1361 = vxpose.xlu0.b32.cont [11/16] %v951, 128
        %1362 = vxpose.xlu0.b32.cont [12/16] %v957, 128
        %1363 = vxpose.xlu0.b32.cont [13/16] %v963, 128
        %1364 = vxpose.xlu0.b32.cont [14/16] %v969, 128
        %1365 = vxpose.xlu0.b32.cont [15/16] %v975, 128
        %1366 = vxpose.xlu0.b32.end [16/16] %v981, 128
        %v1367 = vpop.trf.xlu0
        %v1368 = vpop.trf.xlu0
        %v1369 = vpop.trf.xlu0
        %v1370 = vpop.trf.xlu0
        %v1371 = vpop.trf.xlu0
        %v1372 = vpop.trf.xlu0
        %v1373 = vpop.trf.xlu0
        %v1374 = vpop.trf.xlu0
        %v1375 = vpop.trf.xlu0
        %v1376 = vpop.trf.xlu0
        %v1377 = vpop.trf.xlu0
        %v1378 = vpop.trf.xlu0
        %v1379 = vpop.trf.xlu0
        %v1380 = vpop.trf.xlu0
        %v1381 = vpop.trf.xlu0
        %v1382 = vpop.trf.xlu0
        %v1383 = vpack.c.bf16 %v1336, %v1335
        %v1384 = vpack.c.bf16 %v1338, %v1337
        %v1385 = vpack.c.bf16 %v1340, %v1339
        %v1386 = vpack.c.bf16 %v1342, %v1341
        %v1387 = vpack.c.bf16 %v1344, %v1343
        %v1388 = vpack.c.bf16 %v1346, %v1345
        %v1389 = vpack.c.bf16 %v1348, %v1347
        %v1390 = vpack.c.bf16 %v1350, %v1349
        %v1391 = vpack.c.bf16 %v1368, %v1367
        %v1392 = vpack.c.bf16 %v1370, %v1369
        %v1393 = vpack.c.bf16 %v1372, %v1371
        %v1394 = vpack.c.bf16 %v1374, %v1373
        %v1395 = vpack.c.bf16 %v1376, %v1375
        %v1396 = vpack.c.bf16 %v1378, %v1377
        %v1397 = vpack.c.bf16 %v1380, %v1379
        %v1398 = vpack.c.bf16 %v1382, %v1381
        %v1415 = vunpack.c.l.b16 %v1383
        %v1416 = vunpack.c.h.b16 %v1383
        %v1417 = vunpack.c.l.b16 %v1384
        %v1418 = vunpack.c.h.b16 %v1384
        %v1419 = vunpack.c.l.b16 %v1385
        %v1420 = vunpack.c.h.b16 %v1385
        %v1421 = vunpack.c.l.b16 %v1386
        %v1422 = vunpack.c.h.b16 %v1386
        %v1423 = vunpack.c.l.b16 %v1387
        %v1424 = vunpack.c.h.b16 %v1387
        %v1425 = vunpack.c.l.b16 %v1388
        %v1426 = vunpack.c.h.b16 %v1388
        %v1427 = vunpack.c.l.b16 %v1389
        %v1428 = vunpack.c.h.b16 %v1389
        %v1429 = vunpack.c.l.b16 %v1390
        %v1430 = vunpack.c.h.b16 %v1390
        %v1431 = vunpack.c.l.b16 %v1391
        %v1432 = vunpack.c.h.b16 %v1391
        %v1433 = vunpack.c.l.b16 %v1392
        %v1434 = vunpack.c.h.b16 %v1392
        %v1435 = vunpack.c.l.b16 %v1393
        %v1436 = vunpack.c.h.b16 %v1393
        %v1437 = vunpack.c.l.b16 %v1394
        %v1438 = vunpack.c.h.b16 %v1394
        %v1439 = vunpack.c.l.b16 %v1395
        %v1440 = vunpack.c.h.b16 %v1395
        %v1441 = vunpack.c.l.b16 %v1396
        %v1442 = vunpack.c.h.b16 %v1396
        %v1443 = vunpack.c.l.b16 %v1397
        %v1444 = vunpack.c.h.b16 %v1397
        %v1445 = vunpack.c.l.b16 %v1398
        %v1446 = vunpack.c.h.b16 %v1398
        %v1447 = vpack.c.b16 %v1415, %v1415
        %v1448 = vpack.c.b16 %v1416, %v1416
        %v1449 = vpack.c.b16 %v1417, %v1417
        %v1450 = vpack.c.b16 %v1418, %v1418
        %v1451 = vpack.c.b16 %v1419, %v1419
        %v1452 = vpack.c.b16 %v1420, %v1420
        %v1453 = vpack.c.b16 %v1421, %v1421
        %v1454 = vpack.c.b16 %v1422, %v1422
        %v1455 = vpack.c.b16 %v1423, %v1423
        %v1456 = vpack.c.b16 %v1424, %v1424
        %v1457 = vpack.c.b16 %v1425, %v1425
        %v1458 = vpack.c.b16 %v1426, %v1426
        %v1459 = vpack.c.b16 %v1427, %v1427
        %v1460 = vpack.c.b16 %v1428, %v1428
        %v1461 = vpack.c.b16 %v1429, %v1429
        %v1462 = vpack.c.b16 %v1430, %v1430
        %v1463 = vpack.c.b16 %v1431, %v1431
        %v1464 = vpack.c.b16 %v1432, %v1432
        %v1465 = vpack.c.b16 %v1433, %v1433
        %v1466 = vpack.c.b16 %v1434, %v1434
        %v1467 = vpack.c.b16 %v1435, %v1435
        %v1468 = vpack.c.b16 %v1436, %v1436
        %v1469 = vpack.c.b16 %v1437, %v1437
        %v1470 = vpack.c.b16 %v1438, %v1438
        %v1471 = vpack.c.b16 %v1439, %v1439
        %v1472 = vpack.c.b16 %v1440, %v1440
        %v1473 = vpack.c.b16 %v1441, %v1441
        %v1474 = vpack.c.b16 %v1442, %v1442
        %v1475 = vpack.c.b16 %v1443, %v1443
        %v1476 = vpack.c.b16 %v1444, %v1444
        %v1477 = vpack.c.b16 %v1445, %v1445
        %v1478 = vpack.c.b16 %v1446, %v1446
        %1511 = vst [vmem:[%s318] sm:$0xf] %v1447
        %1512 = vst [vmem:[%s318 + $0x4] sm:$0xf] %v1448
        %1513 = vst [vmem:[%s318 + $0x8] sm:$0xf] %v1449
        %1514 = vst [vmem:[%s318 + $0xc] sm:$0xf] %v1450
        %1515 = vst [vmem:[%s318 + $0x10] sm:$0xf] %v1451
        %1516 = vst [vmem:[%s318 + $0x14] sm:$0xf] %v1452
        %1517 = vst [vmem:[%s318 + $0x18] sm:$0xf] %v1453
        %1518 = vst [vmem:[%s318 + $0x1c] sm:$0xf] %v1454
        %1519 = vst [vmem:[%s318 + $0x20] sm:$0xf] %v1455
        %1520 = vst [vmem:[%s318 + $0x24] sm:$0xf] %v1456
        %1521 = vst [vmem:[%s318 + $0x28] sm:$0xf] %v1457
        %1522 = vst [vmem:[%s318 + $0x2c] sm:$0xf] %v1458
        %1523 = vst [vmem:[%s318 + $0x30] sm:$0xf] %v1459
        %1524 = vst [vmem:[%s318 + $0x34] sm:$0xf] %v1460
        %1525 = vst [vmem:[%s318 + $0x38] sm:$0xf] %v1461
        %1526 = vst [vmem:[%s318 + $0x3c] sm:$0xf] %v1462
        %1527 = vst [vmem:[%s318 + $0x40] sm:$0xf] %v1463
        %1528 = vst [vmem:[%s318 + $0x44] sm:$0xf] %v1464
        %1529 = vst [vmem:[%s318 + $0x48] sm:$0xf] %v1465
        %1530 = vst [vmem:[%s318 + $0x4c] sm:$0xf] %v1466
        %1531 = vst [vmem:[%s318 + $0x50] sm:$0xf] %v1467
        %1532 = vst [vmem:[%s318 + $0x54] sm:$0xf] %v1468
        %1533 = vst [vmem:[%s318 + $0x58] sm:$0xf] %v1469
        %1534 = vst [vmem:[%s318 + $0x5c] sm:$0xf] %v1470
        %1535 = vst [vmem:[%s318 + $0x60] sm:$0xf] %v1471
        %1536 = vst [vmem:[%s318 + $0x64] sm:$0xf] %v1472
        %1537 = vst [vmem:[%s318 + $0x68] sm:$0xf] %v1473
        %1538 = vst [vmem:[%s318 + $0x6c] sm:$0xf] %v1474
        %1539 = vst [vmem:[%s318 + $0x70] sm:$0xf] %v1475
        %1540 = vst [vmem:[%s318 + $0x74] sm:$0xf] %v1476
        %1541 = vst [vmem:[%s318 + $0x78] sm:$0xf] %v1477
        %1542 = vst [vmem:[%s318 + $0x7c] sm:$0xf] %v1478
        %s1543 = sand.u32 %s159, 1
        %s1544 = scalar_lea.sflag [#allocation3], %s1543
        %s1545 = sand.u32 %s159, 1
        %s1546 = smul.addr %s1545, 128
        %s1547 = scalar_lea.vmem [#allocation2], %s1546
        %s1548 = sand.u32 %s25, 1
        %s1549 = scalar_lea.sflag [#allocation5], %s1548
        %s1550 = sand.u32 %s187, 1
        %s1551 = smul.addr %s1550, 128
        %s1552 = scalar_lea.vmem [#allocation4], %s1551
        %s1553 = sand.u32 %s25, 1
        %s1554 = scalar_lea.sflag [#allocation5], %s1553
        %s1555 = sand.u32 %s215, 1
        %s1556 = smul.addr %s1555, 128
        %s1557 = scalar_lea.vmem [#allocation6], %s1556
        // Predicated region
        $region41: #{tpu_custom_call.1} parent=39 // pred_check
          %p1558 = pneg %p169
        $region42: #{tpu_custom_call.1} parent=39 // pred_check_branch
          %1560 = sbr.rel (%p1558) target = $region44
        $region43: #{tpu_custom_call.1} parent=39 // pred_region
          %s1561 = smul.u32 32, %s30
          %s1563 = ssub.s32 2048, 2048
          %1564 = vsyncadd %s1544, %s1563
          %s1565 = smul.addr %s29, 32
          %s1566 = sadd.s32 %s1561, %s1565
          %s1567 = smul.addr %s1566, 64
          %s1568 = scalar_lea.hbm %s5, %s1567
          %s1569 = sshll.u32 %s1547, 4
          %s1570 = int_to_ptr.vmem [resolvable:$true] %s1569
          %1575 = dma.vmem_to_hbm [thread:$0]  %s1570, 2048, %s1568, %s1544, 64, 64, 4
        $region44: #{tpu_custom_call.1} parent=39 // pred_fallthru
          _
        // Predicated region
        $region45: #{tpu_custom_call.1} parent=39 // pred_check
          %p1576 = pneg %p197
        $region46: #{tpu_custom_call.1} parent=39 // pred_check_branch
          %1578 = sbr.rel (%p1576) target = $region48
        $region47: #{tpu_custom_call.1} parent=39 // pred_region
          %s1579 = smul.u32 2, %s30
          %s1581 = ssub.s32 2048, 2048
          %1582 = vsyncadd %s1549, %s1581
          %s1583 = smul.addr %s29, 32
          %s1584 = sadd.s32 %s1579, %s1583
          %s1585 = smul.addr %s1584, 64
          %s1586 = scalar_lea.hbm %s6, %s1585
          %s1587 = sshll.u32 %s1552, 4
          %s1588 = int_to_ptr.vmem [resolvable:$true] %s1587
          %1593 = dma.vmem_to_hbm [thread:$0]  %s1588, 2048, %s1586, %s1549, 128, 128, 8
        $region48: #{tpu_custom_call.1} parent=39 // pred_fallthru
          _
        // Predicated region
        $region49: #{tpu_custom_call.1} parent=39 // pred_check
          %p1594 = pneg %p225
        $region50: #{tpu_custom_call.1} parent=39 // pred_check_branch
          %1596 = sbr.rel (%p1594) target = $region52
        $region51: #{tpu_custom_call.1} parent=39 // pred_region
          %s1597 = smul.u32 32, %s30
          %s1599 = ssub.s32 2048, 2048
          %1600 = vsyncadd %s1554, %s1599
          %s1601 = smul.addr %s29, 32
          %s1602 = sadd.s32 %s1597, %s1601
          %s1603 = smul.addr %s1602, 64
          %s1604 = scalar_lea.hbm %s7, %s1603
          %s1605 = sshll.u32 %s1557, 4
          %s1606 = int_to_ptr.vmem [resolvable:$true] %s1605
          %1611 = dma.vmem_to_hbm [thread:$0]  %s1606, 2048, %s1604, %s1554, 64, 64, 4
        $region52: #{tpu_custom_call.1} parent=39 // pred_fallthru
          _
      $region40: #{tpu_custom_call.1} parent=5 // pred_fallthru
        _
      %p1612 = scmp.le.s32.totalorder 2, %s20
      // Predicated region
      $region53: #{tpu_custom_call.1} parent=5 // pred_check
        %p1613 = pneg %p1612
      $region54: #{tpu_custom_call.1} parent=5 // pred_check_branch
        %1615 = sbr.rel (%p1613) target = $region56
      $region55: #{tpu_custom_call.1} parent=5 // pred_region
        %s1616 = ssub.s32 %s20, 2
        // Predicated region
        $region57: #{tpu_custom_call.1} parent=55 // pred_check
          %p1617 = pneg %p175
        $region58: #{tpu_custom_call.1} parent=55 // pred_check_branch
          %1619 = sbr.rel (%p1617) target = $region60
        $region59: #{tpu_custom_call.1} parent=55 // pred_region
          %s1620 = sand.u32 %s160, 1
          %s1621 = scalar_lea.sflag [#allocation3], %s1620
          %s1622 = sand.u32 %s160, 1
          %s1623 = smul.addr %s1622, 128
          %s1624 = scalar_lea.vmem [#allocation2], %s1623
          %1625 = dma.done %s1621, 2048
        $region60: #{tpu_custom_call.1} parent=55 // pred_fallthru
          _
        // Predicated region
        $region61: #{tpu_custom_call.1} parent=55 // pred_check
          %p1626 = pneg %p203
        $region62: #{tpu_custom_call.1} parent=55 // pred_check_branch
          %1628 = sbr.rel (%p1626) target = $region64
        $region63: #{tpu_custom_call.1} parent=55 // pred_region
          %s1629 = sand.u32 %s26, 1
          %s1630 = scalar_lea.sflag [#allocation5], %s1629
          %s1631 = sand.u32 %s188, 1
          %s1632 = smul.addr %s1631, 128
          %s1633 = scalar_lea.vmem [#allocation4], %s1632
          %1634 = dma.done %s1630, 2048
        $region64: #{tpu_custom_call.1} parent=55 // pred_fallthru
          _
        // Predicated region
        $region65: #{tpu_custom_call.1} parent=55 // pred_check
          %p1635 = pneg %p231
        $region66: #{tpu_custom_call.1} parent=55 // pred_check_branch
          %1637 = sbr.rel (%p1635) target = $region68
        $region67: #{tpu_custom_call.1} parent=55 // pred_region
          %s1638 = sand.u32 %s26, 1
          %s1639 = scalar_lea.sflag [#allocation5], %s1638
          %s1640 = sand.u32 %s216, 1
          %s1641 = smul.addr %s1640, 128
          %s1642 = scalar_lea.vmem [#allocation6], %s1641
          %1643 = dma.done %s1639, 2048
        $region68: #{tpu_custom_call.1} parent=55 // pred_fallthru
          _
      $region56: #{tpu_custom_call.1} parent=5 // pred_fallthru
        _
    $region6: #{tpu_custom_call.1} parent=1 // loop_footer
      %s24 = sadd.s32 1, %s20
    $region7: #{tpu_custom_call.1} parent=1 // loop_footer_branch
      %19 = sbr.rel target = $region3
    $region8: #{tpu_custom_call.1} parent=1 // loop_exit
      _
    %1644 = vsyncpa [#allocation3], 1
    %s1645 = scalar_lea.sflag [#allocation3], 1
    %1646 = vsyncpa %s1645, 1
    %1647 = vsyncpa [#allocation5], 1
    %s1648 = scalar_lea.sflag [#allocation5], 1
    %1649 = vsyncpa %s1648, 1

</llo_original>
